<compile_context>
chip_gen: v5e
topology: v5e:2x2
jax: 0.10.0
libtpu: 0.0.40
codegen_flags: <defaults>
</compile_context>

<pallas_src>
import jax
import jax.numpy as jnp
from jax.experimental import pallas as pl
from jax.experimental.pallas import tpu as pltpu


def _round_up(n, m):
    return ((n + m - 1) // m) * m


# ---------------------------------------------------------------------------
# Kernel: fused twin-Q forward for one batch tile.
# ---------------------------------------------------------------------------
def critic_kernel(x_ref, u_ref,
                  w1x_ref, w1u_ref, b1_ref,
                  w2_ref, b2_ref,
                  w3_ref, b3_ref,
                  out_ref):
    cdt = w1x_ref.dtype  # bf16 compute dtype for MXU operands

    xb = x_ref[...].astype(cdt)
    ub = u_ref[...].astype(cdt)

    # Fused layers 1+4 (concat-free):  h = x @ W1x + u @ W1u + [b1 | b4]
    h = (jnp.dot(xb, w1x_ref[...], preferred_element_type=jnp.float32)
         + jnp.dot(ub, w1u_ref[...], preferred_element_type=jnp.float32)
         + b1_ref[...])
    h = jnp.maximum(h, 0.0).astype(cdt)

    # Fused layers 2+5 (block-diagonal)
    g = jnp.dot(h, w2_ref[...], preferred_element_type=jnp.float32) + b2_ref[...]
    g = jnp.maximum(g, 0.0).astype(cdt)

    # Fused layers 3+6 (block-diagonal) into a lane-dense 128-wide slab
    # (col 0 = q1, col 1 = q2, rest zero padding), then transpose so the batch
    # lands on the lane axis and only the 2 useful rows are written back.
    q = jnp.dot(g, w3_ref[...], preferred_element_type=jnp.float32) + b3_ref[...]
    out_ref[...] = jnp.transpose(q)[:2, :]          # (2, TB) f32


# ---------------------------------------------------------------------------
# One-time parameter preparation: fuse the two heads, zero-pad to lane-aligned
# widths, cast weights to bf16 (biases stay f32, added on the VPU).
# ---------------------------------------------------------------------------
def prepare_critic_params(params, state_dim, compute_dtype=jnp.bfloat16):
    w1, b1 = params["w1"], params["b1"]   # (in, 134), (1, 134)
    w2, b2 = params["w2"], params["b2"]   # (134, 67)
    w3, b3 = params["w3"], params["b3"]   # (67, 1)
    w4, b4 = params["w4"], params["b4"]
    w5, b5 = params["w5"], params["b5"]
    w6, b6 = params["w6"], params["b6"]

    in_dim = w1.shape[0]
    H1 = w1.shape[1]          # 134
    H2 = w2.shape[1]          # 67

    N1 = 2 * H1               # 268 (fused hidden-1)
    N1p = _round_up(N1, 128)  # 384
    N2 = 2 * H2               # 134 (fused hidden-2)
    N2p = _round_up(N2, 128)  # 256
    N3p = 128                 # lane-dense final matmul width (q1/q2 in cols 0/1)

    # Fused first layer  [W1 | W4], split into x-rows and u-rows (no concat).
    w1f = jnp.zeros((in_dim, N1p), jnp.float32)
    w1f = w1f.at[:, :H1].set(w1).at[:, H1:N1].set(w4)
    b1f = jnp.zeros((1, N1p), jnp.float32)
    b1f = b1f.at[:, :H1].set(b1).at[:, H1:N1].set(b4)

    # Block-diagonal second layer  [[W2, 0], [0, W5]]
    w2f = jnp.zeros((N1p, N2p), jnp.float32)
    w2f = w2f.at[:H1, :H2].set(w2).at[H1:N1, H2:N2].set(w5)
    b2f = jnp.zeros((1, N2p), jnp.float32)
    b2f = b2f.at[:, :H2].set(b2).at[:, H2:N2].set(b5)

    # Block-diagonal third layer into columns 0 (q1) and 1 (q2).
    w3f = jnp.zeros((N2p, N3p), jnp.float32)
    w3f = w3f.at[:H2, 0:1].set(w3).at[H2:N2, 1:2].set(w6)
    b3f = jnp.zeros((1, N3p), jnp.float32)
    b3f = b3f.at[:, 0:1].set(b3).at[:, 1:2].set(b6)

    # NOTE: bf16 weights introduce a small quantization shift vs f32 (see
    # loose tolerance below); pass compute_dtype=jnp.float32 for exactness.
    return {
        "w1x": w1f[:state_dim].astype(compute_dtype),   # (state_dim, 384)
        "w1u": w1f[state_dim:].astype(compute_dtype),   # (action_dim, 384)
        "b1": b1f,                                      # (1, 384) f32
        "w2": w2f.astype(compute_dtype),                # (384, 256)
        "b2": b2f,                                      # (1, 256) f32
        "w3": w3f.astype(compute_dtype),                # (256, 128)
        "b3": b3f,                                      # (1, 128) f32
    }


# ---------------------------------------------------------------------------
# Batch-tile selection (per perf review).
# ---------------------------------------------------------------------------
def _default_tb_max():
    """Batch-tile cap per TPU generation: v5e 512 (single vst slot / vreg
    spill guidance), v6e 1024, v7x 2048 (higher HBM BW -> per-step overhead
    dominates sooner)."""
    try:
        kind = jax.devices()[0].device_kind.lower()
    except Exception:
        return 1024
    if "v5e" in kind or "v5 lite" in kind or "v5litepod" in kind:
        return 512
    if "v7" in kind:
        return 2048
    return 1024


def _choose_batch_tile(B, tb_max):
    """Return (TB, num_blocks, padded_B).

    Tiles are multiples of 128 so (a) the transposed (2, TB) output block is
    legal and lane-dense and (b) the in-kernel (TB, 128) transpose works on
    fully tiled shapes.  For batches above one tile we force >= 2 grid steps
    so both v7x TensorCores get work (harmless on single-core v5e/v6e).
    Whenever possible the tile divides the 128-rounded batch exactly so the
    wrapper-side pad (an extra HBM pass) never triggers for typical batches.
    """
    Bp = _round_up(max(B, 1), 128)
    if Bp == 128:
        return 128, 1, 128
    target = min(tb_max, _round_up(pl.cdiv(Bp, 2), 128))
    tb = 0
    cand = target
    while cand >= max(128, target // 2):
        if Bp % cand == 0:
            tb = cand
            break
        cand -= 128
    if tb == 0:          # awkward batch: accept a little extra padding
        tb = target
    nb = pl.cdiv(Bp, tb)
    return tb, nb, nb * tb


# ---------------------------------------------------------------------------
# Wrapper: one pallas_call, batch-tiled grid, weights VMEM-resident,
# transposed narrow (2, B) f32 output.
# ---------------------------------------------------------------------------
@jax.jit
def critic_forward(x, u, fp):
    """Twin-Q forward.  Returns (q1, q2), each (B, 1) float32.

    x: (B, state_dim), u: (B, action_dim); f32 or bf16 (cast happens
    in-kernel, so bf16 inputs halve the input HBM read with no extra wrapper
    pass).  fp: output of prepare_critic_params.
    """
    B, sd = x.shape
    ad = u.shape[1]

    TB, nb, Bp = _choose_batch_tile(B, _default_tb_max())
    if Bp != B:
        # Only triggers when B is not a multiple of 128 (or for awkward
        # non-divisible large batches).
        x = jnp.pad(x, ((0, Bp - B), (0, 0)))
        u = jnp.pad(u, ((0, Bp - B), (0, 0)))

    out = pl.pallas_call(
        critic_kernel,
        grid=(nb,),
        in_specs=[
            pl.BlockSpec((TB, sd), lambda i: (i, 0)),         # x batch tile
            pl.BlockSpec((TB, ad), lambda i: (i, 0)),         # u batch tile
            # Constant index_map -> weights/biases stay VMEM-resident across
            # the whole grid (no re-fetch after the first step).
            pl.BlockSpec(fp["w1x"].shape, lambda i: (0, 0)),
            pl.BlockSpec(fp["w1u"].shape, lambda i: (0, 0)),
            pl.BlockSpec(fp["b1"].shape, lambda i: (0, 0)),
            pl.BlockSpec(fp["w2"].shape, lambda i: (0, 0)),
            pl.BlockSpec(fp["b2"].shape, lambda i: (0, 0)),
            pl.BlockSpec(fp["w3"].shape, lambda i: (0, 0)),
            pl.BlockSpec(fp["b3"].shape, lambda i: (0, 0)),
        ],
        # Transposed narrow output: batch on the lane axis, only 2 real rows.
        out_specs=pl.BlockSpec((2, TB), lambda i: (0, i)),
        out_shape=jax.ShapeDtypeStruct((2, Bp), jnp.float32),
        compiler_params=pltpu.CompilerParams(
            dimension_semantics=("parallel",)),
    )(x, u, fp["w1x"], fp["w1u"], fp["b1"], fp["w2"], fp["b2"],
      fp["w3"], fp["b3"])

    q = out[:, :B]            # single tiny slice of the (2, Bp) slab
    q1 = q[0:1, :].T          # (B, 1)
    q2 = q[1:2, :].T          # (B, 1)
    return q1, q2


# ---------------------------------------------------------------------------
# References & init
# ---------------------------------------------------------------------------
def init_critic_params(key, state_dim, action_dim_critic):
    """PyTorch-style nn.Linear init; weights stored transposed as (in, out)."""
    in_dim = state_dim + action_dim_critic
    dims = [(in_dim, 134), (134, 67), (67, 1),   # Q1 head
            (in_dim, 134), (134, 67), (67, 1)]   # Q2 head
    params = {}
    keys = jax.random.split(key, 2 * len(dims))
    for i, (din, dout) in enumerate(dims):
        bound = 1.0 / jnp.sqrt(float(din))
        params[f"w{i + 1}"] = jax.random.uniform(
            keys[2 * i], (din, dout), jnp.float32, -bound, bound)
        params[f"b{i + 1}"] = jax.random.uniform(
            keys[2 * i + 1], (1, dout), jnp.float32, -bound, bound)
    return params


def critic_forward_ref(x, u, params):
    """Plain-JAX f32 reference with the original (unfused) semantics."""
    xu = jnp.concatenate([x, u], axis=1)
    h = jnp.maximum(xu @ params["w1"] + params["b1"], 0.0)
    h = jnp.maximum(h @ params["w2"] + params["b2"], 0.0)
    q1 = h @ params["w3"] + params["b3"]
    g = jnp.maximum(xu @ params["w4"] + params["b4"], 0.0)
    g = jnp.maximum(g @ params["w5"] + params["b5"], 0.0)
    q2 = g @ params["w6"] + params["b6"]
    return q1, q2


def critic_forward_fused_ref(x, u, fp):
    """Plain-JAX reference using the exact fused/padded bf16 parameters."""
    cdt = fp["w1x"].dtype
    h = (jnp.dot(x.astype(cdt), fp["w1x"], preferred_element_type=jnp.float32)
         + jnp.dot(u.astype(cdt), fp["w1u"], preferred_element_type=jnp.float32)
         + fp["b1"])
    h = jnp.maximum(h, 0.0).astype(cdt)
    g = jnp.dot(h, fp["w2"], preferred_element_type=jnp.float32) + fp["b2"]
    g = jnp.maximum(g, 0.0).astype(cdt)
    out = jnp.dot(g, fp["w3"], preferred_element_type=jnp.float32) + fp["b3"]
    return out[:, 0:1], out[:, 1:2]


if __name__ == "__main__":
    # Small synthetic dims consistent with the module:
    #   state_dim + action_dim_critic feeds Linear(., 134) -> 67 -> 1, twice.
    batch = 8
    state_dim = 30
    action_dim_critic = 40

    key = jax.random.PRNGKey(0)
    kx, ku, kp, kx2, ku2 = jax.random.split(key, 5)

    params = init_critic_params(kp, state_dim, action_dim_critic)
    fused = prepare_critic_params(params, state_dim)   # one-time fuse/pad/cast

    # --- small demo batch (single-tile path) -------------------------------
    x = jax.random.normal(kx, (batch, state_dim), jnp.float32)
    u = jax.random.normal(ku, (batch, action_dim_critic), jnp.float32)

    q1, q2 = critic_forward(x, u, fused)
    jax.block_until_ready((q1, q2))
    assert q1.shape == (batch, 1) and q2.shape == (batch, 1)

    # Tight check: kernel vs plain-JAX with identical fused bf16 params.
    r1, r2 = critic_forward_fused_ref(x, u, fused)
    assert jnp.allclose(q1, r1, atol=1e-3, rtol=1e-3)
    assert jnp.allclose(q2, r2, atol=1e-3, rtol=1e-3)

    # Loose sanity check vs full-f32 original semantics (bf16 weights =>
    # small quantization error is expected).
    f1, f2 = critic_forward_ref(x, u, params)
    assert jnp.allclose(q1, f1, atol=1e-1, rtol=1e-1)
    assert jnp.allclose(q2, f2, atol=1e-1, rtol=1e-1)

    # --- training-sized batch exercising the tiled, >=2-step grid path -----
    B2 = 512
    x2 = jax.random.normal(kx2, (B2, state_dim), jnp.float32)
    u2 = jax.random.normal(ku2, (B2, action_dim_critic), jnp.float32)
    p1, p2 = critic_forward(x2, u2, fused)
    jax.block_until_ready((p1, p2))
    assert p1.shape == (B2, 1) and p2.shape == (B2, 1)
    s1, s2 = critic_forward_fused_ref(x2, u2, fused)
    assert jnp.allclose(p1, s1, atol=1e-3, rtol=1e-3)
    assert jnp.allclose(p2, s2, atol=1e-3, rtol=1e-3)

    print("KERNEL_OK")
</pallas_src>

<mosaic_0001>
module attributes {stable_mosaic.version = 11 : i64} {
  func.func @critic_kernel(%arg0: i32, %arg1: memref<128x30xf32, #tpu.memory_space<vmem>>, %arg2: memref<128x40xf32, #tpu.memory_space<vmem>>, %arg3: memref<30x384xbf16, #tpu.memory_space<vmem>>, %arg4: memref<40x384xbf16, #tpu.memory_space<vmem>>, %arg5: memref<1x384xf32, #tpu.memory_space<vmem>>, %arg6: memref<384x256xbf16, #tpu.memory_space<vmem>>, %arg7: memref<1x256xf32, #tpu.memory_space<vmem>>, %arg8: memref<256x128xbf16, #tpu.memory_space<vmem>>, %arg9: memref<1x128xf32, #tpu.memory_space<vmem>>, %arg10: memref<2x128xf32, #tpu.memory_space<vmem>>) attributes {dimension_semantics = [#tpu.dimension_semantics<parallel>], iteration_bounds = array<i64: 1>, scalar_prefetch = 0 : i64, scratch_operands = 0 : i64, tpu.core_type = #tpu.core_type<tc>, window_params = [{transform_indices = @transform_0, window_bounds = array<i64: 128, 30>}, {transform_indices = @transform_1, window_bounds = array<i64: 128, 40>}, {pipeline_mode = #tpu.pipeline_mode<synchronous>, transform_indices = @transform_2, window_bounds = array<i64: 30, 384>}, {pipeline_mode = #tpu.pipeline_mode<synchronous>, transform_indices = @transform_3, window_bounds = array<i64: 40, 384>}, {pipeline_mode = #tpu.pipeline_mode<synchronous>, transform_indices = @transform_4, window_bounds = array<i64: 1, 384>}, {pipeline_mode = #tpu.pipeline_mode<synchronous>, transform_indices = @transform_5, window_bounds = array<i64: 384, 256>}, {pipeline_mode = #tpu.pipeline_mode<synchronous>, transform_indices = @transform_6, window_bounds = array<i64: 1, 256>}, {pipeline_mode = #tpu.pipeline_mode<synchronous>, transform_indices = @transform_7, window_bounds = array<i64: 256, 128>}, {pipeline_mode = #tpu.pipeline_mode<synchronous>, transform_indices = @transform_8, window_bounds = array<i64: 1, 128>}, {transform_indices = @transform_9, window_bounds = array<i64: 2, 128>}]} {
    %c0 = arith.constant 0 : index
    %c0_0 = arith.constant 0 : index
    %0 = vector.load %arg1[%c0, %c0_0] : memref<128x30xf32, #tpu.memory_space<vmem>>, vector<128x30xf32>
    %1 = arith.truncf %0 : vector<128x30xf32> to vector<128x30xbf16>
    %c0_1 = arith.constant 0 : index
    %c0_2 = arith.constant 0 : index
    %2 = vector.load %arg2[%c0_1, %c0_2] : memref<128x40xf32, #tpu.memory_space<vmem>>, vector<128x40xf32>
    %3 = arith.truncf %2 : vector<128x40xf32> to vector<128x40xbf16>
    %c0_3 = arith.constant 0 : index
    %c0_4 = arith.constant 0 : index
    %4 = vector.load %arg3[%c0_3, %c0_4] : memref<30x384xbf16, #tpu.memory_space<vmem>>, vector<30x384xbf16>
    %cst = arith.constant dense<0.000000e+00> : vector<128x384xf32>
    %5 = tpu.matmul %1, %4, %cst {dimension_numbers = #tpu.dot_dimension_numbers<[1], [0], [0], [1], [0, 0, 1, 1], [], []>} : vector<128x30xbf16>, vector<30x384xbf16>, vector<128x384xf32> -> vector<128x384xf32>
    %c0_5 = arith.constant 0 : index
    %c0_6 = arith.constant 0 : index
    %6 = vector.load %arg4[%c0_5, %c0_6] : memref<40x384xbf16, #tpu.memory_space<vmem>>, vector<40x384xbf16>
    %cst_7 = arith.constant dense<0.000000e+00> : vector<128x384xf32>
    %7 = tpu.matmul %3, %6, %cst_7 {dimension_numbers = #tpu.dot_dimension_numbers<[1], [0], [0], [1], [0, 0, 1, 1], [], []>} : vector<128x40xbf16>, vector<40x384xbf16>, vector<128x384xf32> -> vector<128x384xf32>
    %8 = arith.addf %5, %7 : vector<128x384xf32>
    %c0_8 = arith.constant 0 : index
    %c0_9 = arith.constant 0 : index
    %9 = vector.load %arg5[%c0_8, %c0_9] : memref<1x384xf32, #tpu.memory_space<vmem>>, vector<1x384xf32>
    %10 = vector.broadcast %9 : vector<1x384xf32> to vector<128x384xf32>
    %11 = arith.addf %8, %10 : vector<128x384xf32>
    %cst_10 = arith.constant 0.000000e+00 : f32
    %12 = vector.broadcast %cst_10 : f32 to vector<128x384xf32>
    %13 = arith.maximumf %11, %12 : vector<128x384xf32>
    %14 = arith.truncf %13 : vector<128x384xf32> to vector<128x384xbf16>
    %c0_11 = arith.constant 0 : index
    %c0_12 = arith.constant 0 : index
    %15 = vector.load %arg6[%c0_11, %c0_12] : memref<384x256xbf16, #tpu.memory_space<vmem>>, vector<384x256xbf16>
    %cst_13 = arith.constant dense<0.000000e+00> : vector<128x256xf32>
    %16 = tpu.matmul %14, %15, %cst_13 {dimension_numbers = #tpu.dot_dimension_numbers<[1], [0], [0], [1], [0, 0, 1, 1], [], []>} : vector<128x384xbf16>, vector<384x256xbf16>, vector<128x256xf32> -> vector<128x256xf32>
    %c0_14 = arith.constant 0 : index
    %c0_15 = arith.constant 0 : index
    %17 = vector.load %arg7[%c0_14, %c0_15] : memref<1x256xf32, #tpu.memory_space<vmem>>, vector<1x256xf32>
    %18 = vector.broadcast %17 : vector<1x256xf32> to vector<128x256xf32>
    %19 = arith.addf %16, %18 : vector<128x256xf32>
    %cst_16 = arith.constant 0.000000e+00 : f32
    %20 = vector.broadcast %cst_16 : f32 to vector<128x256xf32>
    %21 = arith.maximumf %19, %20 : vector<128x256xf32>
    %22 = arith.truncf %21 : vector<128x256xf32> to vector<128x256xbf16>
    %c0_17 = arith.constant 0 : index
    %c0_18 = arith.constant 0 : index
    %23 = vector.load %arg8[%c0_17, %c0_18] : memref<256x128xbf16, #tpu.memory_space<vmem>>, vector<256x128xbf16>
    %cst_19 = arith.constant dense<0.000000e+00> : vector<128x128xf32>
    %24 = tpu.matmul %22, %23, %cst_19 {dimension_numbers = #tpu.dot_dimension_numbers<[1], [0], [0], [1], [0, 0, 1, 1], [], []>} : vector<128x256xbf16>, vector<256x128xbf16>, vector<128x128xf32> -> vector<128x128xf32>
    %c0_20 = arith.constant 0 : index
    %c0_21 = arith.constant 0 : index
    %25 = vector.load %arg9[%c0_20, %c0_21] : memref<1x128xf32, #tpu.memory_space<vmem>>, vector<1x128xf32>
    %26 = vector.broadcast %25 : vector<1x128xf32> to vector<128x128xf32>
    %27 = arith.addf %24, %26 : vector<128x128xf32>
    %28 = tpu.transpose %27, [1, 0] : vector<128x128xf32> -> vector<128x128xf32>
    %29 = vector.extract_strided_slice %28 {offsets = [0, 0], sizes = [2, 128], strides = [1, 1]} : vector<128x128xf32> to vector<2x128xf32>
    %c0_22 = arith.constant 0 : index
    %c0_23 = arith.constant 0 : index
    %30 = vector.load %arg10[%c0_22, %c0_23] : memref<2x128xf32, #tpu.memory_space<vmem>>, vector<2x128xf32>
    tpu.vector_store %arg10[%c0_22, %c0_23], %29 {strides = array<i32>} : memref<2x128xf32, #tpu.memory_space<vmem>>, vector<2x128xf32>,
    return
  }
  func.func @transform_0(%arg0: i32) -> (i32, i32) {
    %c0_i32 = arith.constant 0 : i32
    %c0_i32_0 = arith.constant 0 : i32
    return %arg0, %c0_i32 : i32, i32
  }
  func.func @transform_1(%arg0: i32) -> (i32, i32) {
    %c0_i32 = arith.constant 0 : i32
    %c0_i32_0 = arith.constant 0 : i32
    return %arg0, %c0_i32 : i32, i32
  }
  func.func @transform_2(%arg0: i32) -> (i32, i32) {
    %c0_i32 = arith.constant 0 : i32
    %c0_i32_0 = arith.constant 0 : i32
    %c0_i32_1 = arith.constant 0 : i32
    return %c0_i32, %c0_i32_0 : i32, i32
  }
  func.func @transform_3(%arg0: i32) -> (i32, i32) {
    %c0_i32 = arith.constant 0 : i32
    %c0_i32_0 = arith.constant 0 : i32
    %c0_i32_1 = arith.constant 0 : i32
    return %c0_i32, %c0_i32_0 : i32, i32
  }
  func.func @transform_4(%arg0: i32) -> (i32, i32) {
    %c0_i32 = arith.constant 0 : i32
    %c0_i32_0 = arith.constant 0 : i32
    %c0_i32_1 = arith.constant 0 : i32
    return %c0_i32, %c0_i32_0 : i32, i32
  }
  func.func @transform_5(%arg0: i32) -> (i32, i32) {
    %c0_i32 = arith.constant 0 : i32
    %c0_i32_0 = arith.constant 0 : i32
    %c0_i32_1 = arith.constant 0 : i32
    return %c0_i32, %c0_i32_0 : i32, i32
  }
  func.func @transform_6(%arg0: i32) -> (i32, i32) {
    %c0_i32 = arith.constant 0 : i32
    %c0_i32_0 = arith.constant 0 : i32
    %c0_i32_1 = arith.constant 0 : i32
    return %c0_i32, %c0_i32_0 : i32, i32
  }
  func.func @transform_7(%arg0: i32) -> (i32, i32) {
    %c0_i32 = arith.constant 0 : i32
    %c0_i32_0 = arith.constant 0 : i32
    %c0_i32_1 = arith.constant 0 : i32
    return %c0_i32, %c0_i32_0 : i32, i32
  }
  func.func @transform_8(%arg0: i32) -> (i32, i32) {
    %c0_i32 = arith.constant 0 : i32
    %c0_i32_0 = arith.constant 0 : i32
    %c0_i32_1 = arith.constant 0 : i32
    return %c0_i32, %c0_i32_0 : i32, i32
  }
  func.func @transform_9(%arg0: i32) -> (i32, i32) {
    %c0_i32 = arith.constant 0 : i32
    %c0_i32_0 = arith.constant 0 : i32
    return %c0_i32, %arg0 : i32, i32
  }
}

</mosaic_0001>

<llo_original>
// kernel: critic_forward.1
$region0: #{critic_forward.1}
  #allocation0 [shape = 'u32[]', space=smem, size = 0x4, offset = 0x4, fixed_abs, tag = 'smem constant byte address 0x4 - core index']
  #allocation1 [shape = 'u32[72,128]{1,0:T(1,128)}', space=vmem, size = 0x9000, scoped, tag = 'internal scratch']
  %s0 = inlined_call_operand.vmem [shape: f32[128,30], index: 0, kind: input, shape index: {}]
  %s1 = inlined_call_operand.vmem [shape: f32[128,40], index: 1, kind: input, shape index: {}]
  %s2 = inlined_call_operand.vmem [shape: bf16[30,384], index: 2, kind: input, shape index: {}]
  %s3 = inlined_call_operand.vmem [shape: bf16[40,384], index: 3, kind: input, shape index: {}]
  %s4 = inlined_call_operand.vmem [shape: f32[1,384], index: 4, kind: input, shape index: {}]
  %s5 = inlined_call_operand.hbm [shape: bf16[384,256], index: 5, kind: input, shape index: {}]
  %s6 = inlined_call_operand.vmem [shape: f32[1,256], index: 6, kind: input, shape index: {}]
  %s7 = inlined_call_operand.vmem [shape: bf16[256,128], index: 7, kind: input, shape index: {}]
  %s8 = inlined_call_operand.vmem [shape: f32[1,128], index: 8, kind: input, shape index: {}]
  %s9 = inlined_call_operand.vmem [shape: f32[2,128], index: 9, kind: output, shape index: {}]
  %s10 = sld [smem:[#allocation0]]
  $region50: #{critic_forward.1} parent=0
    _
  %s12 = ssub.s32 1, %s10
  %s13 = scalar_select 0, %s12, %s10
  $region1: #{critic_forward.1} parent=0
    #allocation2 [shape = 'u8[196608]{0}', space=vmem, size = 0x30000, scoped, tag = 'input window, operand 5, single buffered']
    #allocation3 [shape = 's32[1]{0}', space=sflag, size = 0x4, scoped, tag = 'scoped memory for critic_forward.1']
    %14 = vsyncpa [#allocation3], 0
    // Predicated region
    $region2: #{critic_forward.1} parent=1 // pred_check
      _
    $region3: #{critic_forward.1} parent=1 // pred_check_branch
      %16 = sbr.rel (0) target = $region5
    $region4: #{critic_forward.1} parent=1 // pred_region
      _
    $region5: #{critic_forward.1} parent=1 // pred_fallthru
      _
    // Predicated region
    $region6: #{critic_forward.1} parent=1 // pred_check
      _
    $region7: #{critic_forward.1} parent=1 // pred_check_branch
      %18 = sbr.rel (0) target = $region9
    $region8: #{critic_forward.1} parent=1 // pred_region
      _
    $region9: #{critic_forward.1} parent=1 // pred_fallthru
      _
    // Predicated region
    $region10: #{critic_forward.1} parent=1 // pred_check
      _
    $region11: #{critic_forward.1} parent=1 // pred_check_branch
      %20 = sbr.rel (0) target = $region13
    $region12: #{critic_forward.1} parent=1 // pred_region
      _
    $region13: #{critic_forward.1} parent=1 // pred_fallthru
      _
    // Predicated region
    $region14: #{critic_forward.1} parent=1 // pred_check
      _
    $region15: #{critic_forward.1} parent=1 // pred_check_branch
      %22 = sbr.rel (0) target = $region17
    $region16: #{critic_forward.1} parent=1 // pred_region
      _
    $region17: #{critic_forward.1} parent=1 // pred_fallthru
      _
    // Predicated region
    $region18: #{critic_forward.1} parent=1 // pred_check
      _
    $region19: #{critic_forward.1} parent=1 // pred_check_branch
      %24 = sbr.rel (0) target = $region21
    $region20: #{critic_forward.1} parent=1 // pred_region
      _
    $region21: #{critic_forward.1} parent=1 // pred_fallthru
      _
    // Predicated region
    $region22: #{critic_forward.1} parent=1 // pred_check
      _
    $region23: #{critic_forward.1} parent=1 // pred_check_branch
      %26 = sbr.rel (0) target = $region25
    $region24: #{critic_forward.1} parent=1 // pred_region
      %28 = vsyncadd [#allocation3], 0
      %s29 = sshll.u32 %s5, 4
      %s30 = int_to_ptr.hbm [resolvable:$true] %s29
      %s31 = sshll.u32 [#allocation2], 4
      %s32 = int_to_ptr.vmem [resolvable:$true] %s31
      %37 = dma.hbm_to_vmem [thread:$0]  %s30, 6144, %s32, [#allocation3], 128, 128, 8
    $region25: #{critic_forward.1} parent=1 // pred_fallthru
      _
    // Predicated region
    $region26: #{critic_forward.1} parent=1 // pred_check
      _
    $region27: #{critic_forward.1} parent=1 // pred_check_branch
      %39 = sbr.rel (0) target = $region29
    $region28: #{critic_forward.1} parent=1 // pred_region
      _
    $region29: #{critic_forward.1} parent=1 // pred_fallthru
      _
    // Predicated region
    $region30: #{critic_forward.1} parent=1 // pred_check
      _
    $region31: #{critic_forward.1} parent=1 // pred_check_branch
      %41 = sbr.rel (0) target = $region33
    $region32: #{critic_forward.1} parent=1 // pred_region
      _
    $region33: #{critic_forward.1} parent=1 // pred_fallthru
      _
    // Predicated region
    $region34: #{critic_forward.1} parent=1 // pred_check
      _
    $region35: #{critic_forward.1} parent=1 // pred_check_branch
      %43 = sbr.rel (0) target = $region37
    $region36: #{critic_forward.1} parent=1 // pred_region
      _
    $region37: #{critic_forward.1} parent=1 // pred_fallthru
      _
    // Predicated region
    $region38: #{critic_forward.1} parent=1 // pred_check
      _
    $region39: #{critic_forward.1} parent=1 // pred_check_branch
      %45 = sbr.rel (0) target = $region41
    $region40: #{critic_forward.1} parent=1 // pred_region
      %47 = dma.done [#allocation3], 6144
    $region41: #{critic_forward.1} parent=1 // pred_fallthru
      _
    %v49 = vld [vmem:[%s0] sm:$0xff]
    %v50 = vld [vmem:[%s0 + $0x8] sm:$0xff]
    %v51 = vld [vmem:[%s0 + $0x10] sm:$0xff]
    %v52 = vld [vmem:[%s0 + $0x18] sm:$0xff]
    %v53 = vld [vmem:[%s0 + $0x20] sm:$0xff]
    %v54 = vld [vmem:[%s0 + $0x28] sm:$0xff]
    %v55 = vld [vmem:[%s0 + $0x30] sm:$0xff]
    %v56 = vld [vmem:[%s0 + $0x38] sm:$0xff]
    %v57 = vld [vmem:[%s0 + $0x40] sm:$0xff]
    %v58 = vld [vmem:[%s0 + $0x48] sm:$0xff]
    %v59 = vld [vmem:[%s0 + $0x50] sm:$0xff]
    %v60 = vld [vmem:[%s0 + $0x58] sm:$0xff]
    %v61 = vld [vmem:[%s0 + $0x60] sm:$0xff]
    %v62 = vld [vmem:[%s0 + $0x68] sm:$0xff]
    %v63 = vld [vmem:[%s0 + $0x70] sm:$0xff]
    %v64 = vld [vmem:[%s0 + $0x78] sm:$0xff]
    %v65 = vpack.c.bf16 %v50, %v49
    %v66 = vpack.c.bf16 %v52, %v51
    %v67 = vpack.c.bf16 %v54, %v53
    %v68 = vpack.c.bf16 %v56, %v55
    %v69 = vpack.c.bf16 %v58, %v57
    %v70 = vpack.c.bf16 %v60, %v59
    %v71 = vpack.c.bf16 %v62, %v61
    %v72 = vpack.c.bf16 %v64, %v63
    %v73 = vld [vmem:[%s1] sm:$0xff]
    %v74 = vld [vmem:[%s1 + $0x8] sm:$0xff]
    %v75 = vld [vmem:[%s1 + $0x10] sm:$0xff]
    %v76 = vld [vmem:[%s1 + $0x18] sm:$0xff]
    %v77 = vld [vmem:[%s1 + $0x20] sm:$0xff]
    %v78 = vld [vmem:[%s1 + $0x28] sm:$0xff]
    %v79 = vld [vmem:[%s1 + $0x30] sm:$0xff]
    %v80 = vld [vmem:[%s1 + $0x38] sm:$0xff]
    %v81 = vld [vmem:[%s1 + $0x40] sm:$0xff]
    %v82 = vld [vmem:[%s1 + $0x48] sm:$0xff]
    %v83 = vld [vmem:[%s1 + $0x50] sm:$0xff]
    %v84 = vld [vmem:[%s1 + $0x58] sm:$0xff]
    %v85 = vld [vmem:[%s1 + $0x60] sm:$0xff]
    %v86 = vld [vmem:[%s1 + $0x68] sm:$0xff]
    %v87 = vld [vmem:[%s1 + $0x70] sm:$0xff]
    %v88 = vld [vmem:[%s1 + $0x78] sm:$0xff]
    %v89 = vpack.c.bf16 %v74, %v73
    %v90 = vpack.c.bf16 %v76, %v75
    %v91 = vpack.c.bf16 %v78, %v77
    %v92 = vpack.c.bf16 %v80, %v79
    %v93 = vpack.c.bf16 %v82, %v81
    %v94 = vpack.c.bf16 %v84, %v83
    %v95 = vpack.c.bf16 %v86, %v85
    %v96 = vpack.c.bf16 %v88, %v87
    %v97 = vld [vmem:[%s2] sm:$0xff]
    %v98 = vld [vmem:[%s2 + $0x8] sm:$0xf]
    %v99 = vld [vmem:[%s2 + $0xc] sm:$0xff]
    %v100 = vld [vmem:[%s2 + $0x14] sm:$0xf]
    %v101 = vld [vmem:[%s2 + $0x18] sm:$0xff]
    %v102 = vld [vmem:[%s2 + $0x20] sm:$0xf]
    %v103 = vld [vmem:[%s2 + $0x24] sm:$0x77]
    %v104 = vld [vmem:[%s2 + $0x2c] sm:$0x7]
    %v105 = vld [vmem:[%s3] sm:$0xff]
    %v106 = vld [vmem:[%s3 + $0x8] sm:$0xf]
    %v107 = vld [vmem:[%s3 + $0xc] sm:$0xff]
    %v108 = vld [vmem:[%s3 + $0x14] sm:$0xf]
    %v109 = vld [vmem:[%s3 + $0x18] sm:$0xff]
    %v110 = vld [vmem:[%s3 + $0x20] sm:$0xf]
    %v111 = vld [vmem:[%s3 + $0x24] sm:$0xff]
    %v112 = vld [vmem:[%s3 + $0x2c] sm:$0xf]
    %v113 = vld [vmem:[%s3 + $0x30] sm:$0xff]
    %v114 = vld [vmem:[%s3 + $0x38] sm:$0xf]
    %v125 = vunpack.c.l.b16 %v105
    %v126 = vunpack.c.h.b16 %v105
    %v127 = vunpack.c.l.b16 %v106
    %v128 = vunpack.c.l.b16 %v107
    %v129 = vunpack.c.h.b16 %v107
    %v130 = vunpack.c.l.b16 %v108
    %v131 = vunpack.c.l.b16 %v109
    %v132 = vunpack.c.h.b16 %v109
    %v133 = vunpack.c.l.b16 %v110
    %v134 = vunpack.c.l.b16 %v111
    %v135 = vunpack.c.h.b16 %v111
    %v136 = vunpack.c.l.b16 %v112
    %v137 = vunpack.c.l.b16 %v113
    %v138 = vunpack.c.h.b16 %v113
    %v139 = vunpack.c.l.b16 %v114
    %v140 = vpack.c.b16 %v128, %v125
    %v141 = vpack.c.b16 %v129, %v126
    %v142 = vpack.c.b16 %v130, %v127
    %v143 = vpack.c.b16 %v134, %v131
    %v144 = vpack.c.b16 %v135, %v132
    %v145 = vpack.c.b16 %v136, %v133
    %v146 = vpack.c.b16 %v137, %v137
    %v147 = vpack.c.b16 %v138, %v138
    %v148 = vpack.c.b16 %v139, %v139
    %vm155 = vcmask 326656
    %v157 = vsel %vm155, %v89, 0
    %v160 = vsel %vm155, %v90, 0
    %v163 = vsel %vm155, %v91, 0
    %v166 = vsel %vm155, %v92, 0
    %v169 = vsel %vm155, %v93, 0
    %v172 = vsel %vm155, %v94, 0
    %v175 = vsel %vm155, %v95, 0
    %v178 = vsel %vm155, %v96, 0
    %vm180 = vcmask 1043456
    %v182 = vsel %vm180, %v146, 0
    %v185 = vsel %vm180, %v147, 0
    %v188 = vsel %vm180, %v148, 0
    %190 = vmatpush.bf16.msra.mxu0 0
    %191 = vmatpush.bf16.msra.mxu0 0
    %192 = vmatpush.bf16.msra.mxu0 0
    %193 = vmatpush.bf16.msra.mxu0 0
    %194 = vmatpush.bf16.msra.mxu0 0
    %195 = vmatpush.bf16.msra.mxu0 %v182
    %196 = vmatpush.bf16.msra.mxu0 %v143
    %197 = vmatpush.bf16.msra.mxu0 %v140
    %198 = vmatmul.bf16.gmra.mxu0 %v157
    %v199 = vpop.f32.mrf.mxu0
    %v200 = vadd.f32 0.0, %v199
    %v201 = vpop.f32.mrf.mxu0
    %v202 = vadd.f32 0.0, %v201
    %203 = vmatmul.bf16.gmra.mxu0 %v160
    %v204 = vpop.f32.mrf.mxu0
    %v205 = vadd.f32 0.0, %v204
    %v206 = vpop.f32.mrf.mxu0
    %v207 = vadd.f32 0.0, %v206
    %208 = vmatmul.bf16.gmra.mxu0 %v163
    %v209 = vpop.f32.mrf.mxu0
    %v210 = vadd.f32 0.0, %v209
    %v211 = vpop.f32.mrf.mxu0
    %v212 = vadd.f32 0.0, %v211
    %213 = vmatmul.bf16.gmra.mxu0 %v166
    %v214 = vpop.f32.mrf.mxu0
    %v215 = vadd.f32 0.0, %v214
    %v216 = vpop.f32.mrf.mxu0
    %v217 = vadd.f32 0.0, %v216
    %218 = vmatmul.bf16.gmra.mxu0 %v169
    %v219 = vpop.f32.mrf.mxu0
    %v220 = vadd.f32 0.0, %v219
    %v221 = vpop.f32.mrf.mxu0
    %v222 = vadd.f32 0.0, %v221
    %223 = vmatmul.bf16.gmra.mxu0 %v172
    %v224 = vpop.f32.mrf.mxu0
    %v225 = vadd.f32 0.0, %v224
    %v226 = vpop.f32.mrf.mxu0
    %v227 = vadd.f32 0.0, %v226
    %228 = vmatmul.bf16.gmra.mxu0 %v175
    %v229 = vpop.f32.mrf.mxu0
    %v230 = vadd.f32 0.0, %v229
    %v231 = vpop.f32.mrf.mxu0
    %v232 = vadd.f32 0.0, %v231
    %233 = vmatmul.bf16.gmra.mxu0 %v178
    %v234 = vpop.f32.mrf.mxu0
    %v235 = vadd.f32 0.0, %v234
    %v236 = vpop.f32.mrf.mxu0
    %v237 = vadd.f32 0.0, %v236
    %238 = vdwg.mxu0
    %239 = vmatpush.bf16.msra.mxu0 0
    %240 = vmatpush.bf16.msra.mxu0 0
    %241 = vmatpush.bf16.msra.mxu0 0
    %242 = vmatpush.bf16.msra.mxu0 0
    %243 = vmatpush.bf16.msra.mxu0 0
    %244 = vmatpush.bf16.msra.mxu0 %v185
    %245 = vmatpush.bf16.msra.mxu0 %v144
    %246 = vmatpush.bf16.msra.mxu0 %v141
    %247 = vmatmul.bf16.gmra.mxu0 %v157
    %v248 = vpop.f32.mrf.mxu0
    %v249 = vadd.f32 0.0, %v248
    %v250 = vpop.f32.mrf.mxu0
    %v251 = vadd.f32 0.0, %v250
    %252 = vmatmul.bf16.gmra.mxu0 %v160
    %v253 = vpop.f32.mrf.mxu0
    %v254 = vadd.f32 0.0, %v253
    %v255 = vpop.f32.mrf.mxu0
    %v256 = vadd.f32 0.0, %v255
    %257 = vmatmul.bf16.gmra.mxu0 %v163
    %v258 = vpop.f32.mrf.mxu0
    %v259 = vadd.f32 0.0, %v258
    %v260 = vpop.f32.mrf.mxu0
    %v261 = vadd.f32 0.0, %v260
    %262 = vmatmul.bf16.gmra.mxu0 %v166
    %v263 = vpop.f32.mrf.mxu0
    %v264 = vadd.f32 0.0, %v263
    %v265 = vpop.f32.mrf.mxu0
    %v266 = vadd.f32 0.0, %v265
    %267 = vmatmul.bf16.gmra.mxu0 %v169
    %v268 = vpop.f32.mrf.mxu0
    %v269 = vadd.f32 0.0, %v268
    %v270 = vpop.f32.mrf.mxu0
    %v271 = vadd.f32 0.0, %v270
    %272 = vmatmul.bf16.gmra.mxu0 %v172
    %v273 = vpop.f32.mrf.mxu0
    %v274 = vadd.f32 0.0, %v273
    %v275 = vpop.f32.mrf.mxu0
    %v276 = vadd.f32 0.0, %v275
    %277 = vmatmul.bf16.gmra.mxu0 %v175
    %v278 = vpop.f32.mrf.mxu0
    %v279 = vadd.f32 0.0, %v278
    %v280 = vpop.f32.mrf.mxu0
    %v281 = vadd.f32 0.0, %v280
    %282 = vmatmul.bf16.gmra.mxu0 %v178
    %v283 = vpop.f32.mrf.mxu0
    %v284 = vadd.f32 0.0, %v283
    %v285 = vpop.f32.mrf.mxu0
    %v286 = vadd.f32 0.0, %v285
    %287 = vdwg.mxu0
    %288 = vmatpush.bf16.msra.mxu0 0
    %289 = vmatpush.bf16.msra.mxu0 0
    %290 = vmatpush.bf16.msra.mxu0 0
    %291 = vmatpush.bf16.msra.mxu0 0
    %292 = vmatpush.bf16.msra.mxu0 0
    %293 = vmatpush.bf16.msra.mxu0 %v188
    %294 = vmatpush.bf16.msra.mxu0 %v145
    %295 = vmatpush.bf16.msra.mxu0 %v142
    %296 = vmatmul.bf16.gmra.mxu0 %v157
    %v297 = vpop.f32.mrf.mxu0
    %v298 = vadd.f32 0.0, %v297
    %v299 = vpop.f32.mrf.mxu0
    %v300 = vadd.f32 0.0, %v299
    %301 = vmatmul.bf16.gmra.mxu0 %v160
    %v302 = vpop.f32.mrf.mxu0
    %v303 = vadd.f32 0.0, %v302
    %v304 = vpop.f32.mrf.mxu0
    %v305 = vadd.f32 0.0, %v304
    %306 = vmatmul.bf16.gmra.mxu0 %v163
    %v307 = vpop.f32.mrf.mxu0
    %v308 = vadd.f32 0.0, %v307
    %v309 = vpop.f32.mrf.mxu0
    %v310 = vadd.f32 0.0, %v309
    %311 = vmatmul.bf16.gmra.mxu0 %v166
    %v312 = vpop.f32.mrf.mxu0
    %v313 = vadd.f32 0.0, %v312
    %v314 = vpop.f32.mrf.mxu0
    %v315 = vadd.f32 0.0, %v314
    %316 = vmatmul.bf16.gmra.mxu0 %v169
    %v317 = vpop.f32.mrf.mxu0
    %v318 = vadd.f32 0.0, %v317
    %v319 = vpop.f32.mrf.mxu0
    %v320 = vadd.f32 0.0, %v319
    %321 = vmatmul.bf16.gmra.mxu0 %v172
    %v322 = vpop.f32.mrf.mxu0
    %v323 = vadd.f32 0.0, %v322
    %v324 = vpop.f32.mrf.mxu0
    %v325 = vadd.f32 0.0, %v324
    %326 = vmatmul.bf16.gmra.mxu0 %v175
    %v327 = vpop.f32.mrf.mxu0
    %v328 = vadd.f32 0.0, %v327
    %v329 = vpop.f32.mrf.mxu0
    %v330 = vadd.f32 0.0, %v329
    %331 = vmatmul.bf16.gmra.mxu0 %v178
    %v332 = vpop.f32.mrf.mxu0
    %v333 = vadd.f32 0.0, %v332
    %v334 = vpop.f32.mrf.mxu0
    %v335 = vadd.f32 0.0, %v334
    %336 = vdwg.mxu0
    %v345 = vunpack.c.l.b16 %v97
    %v346 = vunpack.c.h.b16 %v97
    %v347 = vunpack.c.l.b16 %v98
    %v348 = vunpack.c.l.b16 %v99
    %v349 = vunpack.c.h.b16 %v99
    %v350 = vunpack.c.l.b16 %v100
    %v351 = vunpack.c.l.b16 %v101
    %v352 = vunpack.c.h.b16 %v101
    %v353 = vunpack.c.l.b16 %v102
    %v354 = vunpack.c.l.b16 %v103
    %v355 = vunpack.c.h.b16 %v103
    %v356 = vunpack.c.l.b16 %v104
    %v357 = vpack.c.b16 %v348, %v345
    %v358 = vpack.c.b16 %v349, %v346
    %v359 = vpack.c.b16 %v350, %v347
    %v360 = vpack.c.b16 %v354, %v351
    %v361 = vpack.c.b16 %v355, %v352
    %v362 = vpack.c.b16 %v356, %v353
    %vm366 = vcmask 244736
    %v368 = vsel %vm366, %v65, 0
    %v371 = vsel %vm366, %v66, 0
    %v374 = vsel %vm366, %v67, 0
    %v377 = vsel %vm366, %v68, 0
    %v380 = vsel %vm366, %v69, 0
    %v383 = vsel %vm366, %v70, 0
    %v386 = vsel %vm366, %v71, 0
    %v389 = vsel %vm366, %v72, 0
    %vm391 = vcmask 1046528
    %v393 = vsel %vm391, %v360, 0
    %v396 = vsel %vm391, %v361, 0
    %v399 = vsel %vm391, %v362, 0
    %401 = vmatpush.bf16.msra.mxu0 0
    %402 = vmatpush.bf16.msra.mxu0 0
    %403 = vmatpush.bf16.msra.mxu0 0
    %404 = vmatpush.bf16.msra.mxu0 0
    %405 = vmatpush.bf16.msra.mxu0 0
    %406 = vmatpush.bf16.msra.mxu0 0
    %407 = vmatpush.bf16.msra.mxu0 %v393
    %408 = vmatpush.bf16.msra.mxu0 %v357
    %409 = vmatmul.bf16.gmra.mxu0 %v368
    %v410 = vpop.f32.mrf.mxu0
    %v411 = vadd.f32 %v200, %v410
    %v412 = vpop.f32.mrf.mxu0
    %v413 = vadd.f32 %v202, %v412
    %414 = vmatmul.bf16.gmra.mxu0 %v371
    %v415 = vpop.f32.mrf.mxu0
    %v416 = vadd.f32 %v205, %v415
    %v417 = vpop.f32.mrf.mxu0
    %v418 = vadd.f32 %v207, %v417
    %419 = vmatmul.bf16.gmra.mxu0 %v374
    %v420 = vpop.f32.mrf.mxu0
    %v421 = vadd.f32 %v210, %v420
    %v422 = vpop.f32.mrf.mxu0
    %v423 = vadd.f32 %v212, %v422
    %424 = vmatmul.bf16.gmra.mxu0 %v377
    %v425 = vpop.f32.mrf.mxu0
    %v426 = vadd.f32 %v215, %v425
    %v427 = vpop.f32.mrf.mxu0
    %v428 = vadd.f32 %v217, %v427
    %429 = vmatmul.bf16.gmra.mxu0 %v380
    %v430 = vpop.f32.mrf.mxu0
    %v431 = vadd.f32 %v220, %v430
    %v432 = vpop.f32.mrf.mxu0
    %v433 = vadd.f32 %v222, %v432
    %434 = vmatmul.bf16.gmra.mxu0 %v383
    %v435 = vpop.f32.mrf.mxu0
    %v436 = vadd.f32 %v225, %v435
    %v437 = vpop.f32.mrf.mxu0
    %v438 = vadd.f32 %v227, %v437
    %439 = vmatmul.bf16.gmra.mxu0 %v386
    %v440 = vpop.f32.mrf.mxu0
    %v441 = vadd.f32 %v230, %v440
    %v442 = vpop.f32.mrf.mxu0
    %v443 = vadd.f32 %v232, %v442
    %444 = vmatmul.bf16.gmra.mxu0 %v389
    %v445 = vpop.f32.mrf.mxu0
    %v446 = vadd.f32 %v235, %v445
    %v447 = vpop.f32.mrf.mxu0
    %v448 = vadd.f32 %v237, %v447
    %449 = vdwg.mxu0
    %450 = vmatpush.bf16.msra.mxu0 0
    %451 = vmatpush.bf16.msra.mxu0 0
    %452 = vmatpush.bf16.msra.mxu0 0
    %453 = vmatpush.bf16.msra.mxu0 0
    %454 = vmatpush.bf16.msra.mxu0 0
    %455 = vmatpush.bf16.msra.mxu0 0
    %456 = vmatpush.bf16.msra.mxu0 %v396
    %457 = vmatpush.bf16.msra.mxu0 %v358
    %458 = vmatmul.bf16.gmra.mxu0 %v368
    %v459 = vpop.f32.mrf.mxu0
    %v460 = vadd.f32 %v249, %v459
    %v461 = vpop.f32.mrf.mxu0
    %v462 = vadd.f32 %v251, %v461
    %463 = vmatmul.bf16.gmra.mxu0 %v371
    %v464 = vpop.f32.mrf.mxu0
    %v465 = vadd.f32 %v254, %v464
    %v466 = vpop.f32.mrf.mxu0
    %v467 = vadd.f32 %v256, %v466
    %468 = vmatmul.bf16.gmra.mxu0 %v374
    %v469 = vpop.f32.mrf.mxu0
    %v470 = vadd.f32 %v259, %v469
    %v471 = vpop.f32.mrf.mxu0
    %v472 = vadd.f32 %v261, %v471
    %473 = vmatmul.bf16.gmra.mxu0 %v377
    %v474 = vpop.f32.mrf.mxu0
    %v475 = vadd.f32 %v264, %v474
    %v476 = vpop.f32.mrf.mxu0
    %v477 = vadd.f32 %v266, %v476
    %478 = vmatmul.bf16.gmra.mxu0 %v380
    %v479 = vpop.f32.mrf.mxu0
    %v480 = vadd.f32 %v269, %v479
    %v481 = vpop.f32.mrf.mxu0
    %v482 = vadd.f32 %v271, %v481
    %483 = vmatmul.bf16.gmra.mxu0 %v383
    %v484 = vpop.f32.mrf.mxu0
    %v485 = vadd.f32 %v274, %v484
    %v486 = vpop.f32.mrf.mxu0
    %v487 = vadd.f32 %v276, %v486
    %488 = vmatmul.bf16.gmra.mxu0 %v386
    %v489 = vpop.f32.mrf.mxu0
    %v490 = vadd.f32 %v279, %v489
    %v491 = vpop.f32.mrf.mxu0
    %v492 = vadd.f32 %v281, %v491
    %493 = vmatmul.bf16.gmra.mxu0 %v389
    %v494 = vpop.f32.mrf.mxu0
    %v495 = vadd.f32 %v284, %v494
    %v496 = vpop.f32.mrf.mxu0
    %v497 = vadd.f32 %v286, %v496
    %498 = vdwg.mxu0
    %499 = vmatpush.bf16.msra.mxu0 0
    %500 = vmatpush.bf16.msra.mxu0 0
    %501 = vmatpush.bf16.msra.mxu0 0
    %502 = vmatpush.bf16.msra.mxu0 0
    %503 = vmatpush.bf16.msra.mxu0 0
    %504 = vmatpush.bf16.msra.mxu0 0
    %505 = vmatpush.bf16.msra.mxu0 %v399
    %506 = vmatpush.bf16.msra.mxu0 %v359
    %507 = vmatmul.bf16.gmra.mxu0 %v368
    %v508 = vpop.f32.mrf.mxu0
    %v509 = vadd.f32 %v298, %v508
    %v510 = vpop.f32.mrf.mxu0
    %v511 = vadd.f32 %v300, %v510
    %512 = vmatmul.bf16.gmra.mxu0 %v371
    %v513 = vpop.f32.mrf.mxu0
    %v514 = vadd.f32 %v303, %v513
    %v515 = vpop.f32.mrf.mxu0
    %v516 = vadd.f32 %v305, %v515
    %517 = vmatmul.bf16.gmra.mxu0 %v374
    %v518 = vpop.f32.mrf.mxu0
    %v519 = vadd.f32 %v308, %v518
    %v520 = vpop.f32.mrf.mxu0
    %v521 = vadd.f32 %v310, %v520
    %522 = vmatmul.bf16.gmra.mxu0 %v377
    %v523 = vpop.f32.mrf.mxu0
    %v524 = vadd.f32 %v313, %v523
    %v525 = vpop.f32.mrf.mxu0
    %v526 = vadd.f32 %v315, %v525
    %527 = vmatmul.bf16.gmra.mxu0 %v380
    %v528 = vpop.f32.mrf.mxu0
    %v529 = vadd.f32 %v318, %v528
    %v530 = vpop.f32.mrf.mxu0
    %v531 = vadd.f32 %v320, %v530
    %532 = vmatmul.bf16.gmra.mxu0 %v383
    %v533 = vpop.f32.mrf.mxu0
    %v534 = vadd.f32 %v323, %v533
    %v535 = vpop.f32.mrf.mxu0
    %v536 = vadd.f32 %v325, %v535
    %537 = vmatmul.bf16.gmra.mxu0 %v386
    %v538 = vpop.f32.mrf.mxu0
    %v539 = vadd.f32 %v328, %v538
    %v540 = vpop.f32.mrf.mxu0
    %v541 = vadd.f32 %v330, %v540
    %542 = vmatmul.bf16.gmra.mxu0 %v389
    %v543 = vpop.f32.mrf.mxu0
    %v544 = vadd.f32 %v333, %v543
    %v545 = vpop.f32.mrf.mxu0
    %v546 = vadd.f32 %v335, %v545
    %547 = vdwg.mxu0
    %v548 = vld [vmem:[%s4] sm:$0x7]
    %v550 = vperm.slane %v548, 0
    %v551 = vperm.slane %v548, 1
    %v552 = vperm.slane %v548, 2
    %v556 = vadd.f32 %v411, %v550
    %v557 = vadd.f32 %v460, %v551
    %v558 = vadd.f32 %v509, %v552
    %v559 = vadd.f32 %v413, %v550
    %v560 = vadd.f32 %v462, %v551
    %v561 = vadd.f32 %v511, %v552
    %v562 = vadd.f32 %v416, %v550
    %v563 = vadd.f32 %v465, %v551
    %v564 = vadd.f32 %v514, %v552
    %v565 = vadd.f32 %v418, %v550
    %v566 = vadd.f32 %v467, %v551
    %v567 = vadd.f32 %v516, %v552
    %v568 = vadd.f32 %v421, %v550
    %v569 = vadd.f32 %v470, %v551
    %v570 = vadd.f32 %v519, %v552
    %v571 = vadd.f32 %v423, %v550
    %v572 = vadd.f32 %v472, %v551
    %v573 = vadd.f32 %v521, %v552
    %v574 = vadd.f32 %v426, %v550
    %v575 = vadd.f32 %v475, %v551
    %v576 = vadd.f32 %v524, %v552
    %v577 = vadd.f32 %v428, %v550
    %v578 = vadd.f32 %v477, %v551
    %v579 = vadd.f32 %v526, %v552
    %v580 = vadd.f32 %v431, %v550
    %v581 = vadd.f32 %v480, %v551
    %v582 = vadd.f32 %v529, %v552
    %v583 = vadd.f32 %v433, %v550
    %v584 = vadd.f32 %v482, %v551
    %v585 = vadd.f32 %v531, %v552
    %v586 = vadd.f32 %v436, %v550
    %v587 = vadd.f32 %v485, %v551
    %v588 = vadd.f32 %v534, %v552
    %v589 = vadd.f32 %v438, %v550
    %v590 = vadd.f32 %v487, %v551
    %v591 = vadd.f32 %v536, %v552
    %v592 = vadd.f32 %v441, %v550
    %v593 = vadd.f32 %v490, %v551
    %v594 = vadd.f32 %v539, %v552
    %v595 = vadd.f32 %v443, %v550
    %v596 = vadd.f32 %v492, %v551
    %v597 = vadd.f32 %v541, %v552
    %v598 = vadd.f32 %v446, %v550
    %v599 = vadd.f32 %v495, %v551
    %v600 = vadd.f32 %v544, %v552
    %v601 = vadd.f32 %v448, %v550
    %v602 = vadd.f32 %v497, %v551
    %v603 = vadd.f32 %v546, %v552
    %v604 = vmax.f32 %v556, 0.0
    %v605 = vmax.f32 %v557, 0.0
    %v606 = vmax.f32 %v558, 0.0
    %v607 = vmax.f32 %v559, 0.0
    %v608 = vmax.f32 %v560, 0.0
    %v609 = vmax.f32 %v561, 0.0
    %v610 = vmax.f32 %v562, 0.0
    %v611 = vmax.f32 %v563, 0.0
    %v612 = vmax.f32 %v564, 0.0
    %v613 = vmax.f32 %v565, 0.0
    %v614 = vmax.f32 %v566, 0.0
    %v615 = vmax.f32 %v567, 0.0
    %v616 = vmax.f32 %v568, 0.0
    %v617 = vmax.f32 %v569, 0.0
    %v618 = vmax.f32 %v570, 0.0
    %v619 = vmax.f32 %v571, 0.0
    %v620 = vmax.f32 %v572, 0.0
    %v621 = vmax.f32 %v573, 0.0
    %v622 = vmax.f32 %v574, 0.0
    %v623 = vmax.f32 %v575, 0.0
    %v624 = vmax.f32 %v576, 0.0
    %v625 = vmax.f32 %v577, 0.0
    %v626 = vmax.f32 %v578, 0.0
    %v627 = vmax.f32 %v579, 0.0
    %v628 = vmax.f32 %v580, 0.0
    %v629 = vmax.f32 %v581, 0.0
    %v630 = vmax.f32 %v582, 0.0
    %v631 = vmax.f32 %v583, 0.0
    %v632 = vmax.f32 %v584, 0.0
    %v633 = vmax.f32 %v585, 0.0
    %v634 = vmax.f32 %v586, 0.0
    %v635 = vmax.f32 %v587, 0.0
    %v636 = vmax.f32 %v588, 0.0
    %v637 = vmax.f32 %v589, 0.0
    %v638 = vmax.f32 %v590, 0.0
    %v639 = vmax.f32 %v591, 0.0
    %v640 = vmax.f32 %v592, 0.0
    %v641 = vmax.f32 %v593, 0.0
    %v642 = vmax.f32 %v594, 0.0
    %v643 = vmax.f32 %v595, 0.0
    %v644 = vmax.f32 %v596, 0.0
    %v645 = vmax.f32 %v597, 0.0
    %v646 = vmax.f32 %v598, 0.0
    %v647 = vmax.f32 %v599, 0.0
    %v648 = vmax.f32 %v600, 0.0
    %v649 = vmax.f32 %v601, 0.0
    %v650 = vmax.f32 %v602, 0.0
    %v651 = vmax.f32 %v603, 0.0
    %v652 = vpack.c.bf16 %v607, %v604
    %v653 = vpack.c.bf16 %v608, %v605
    %v654 = vpack.c.bf16 %v609, %v606
    %v655 = vpack.c.bf16 %v613, %v610
    %v656 = vpack.c.bf16 %v614, %v611
    %v657 = vpack.c.bf16 %v615, %v612
    %v658 = vpack.c.bf16 %v619, %v616
    %v659 = vpack.c.bf16 %v620, %v617
    %v660 = vpack.c.bf16 %v621, %v618
    %v661 = vpack.c.bf16 %v625, %v622
    %v662 = vpack.c.bf16 %v626, %v623
    %v663 = vpack.c.bf16 %v627, %v624
    %v664 = vpack.c.bf16 %v631, %v628
    %v665 = vpack.c.bf16 %v632, %v629
    %v666 = vpack.c.bf16 %v633, %v630
    %v667 = vpack.c.bf16 %v637, %v634
    %v668 = vpack.c.bf16 %v638, %v635
    %v669 = vpack.c.bf16 %v639, %v636
    %v670 = vpack.c.bf16 %v643, %v640
    %v671 = vpack.c.bf16 %v644, %v641
    %v672 = vpack.c.bf16 %v645, %v642
    %v673 = vpack.c.bf16 %v649, %v646
    %v674 = vpack.c.bf16 %v650, %v647
    %v675 = vpack.c.bf16 %v651, %v648
    %v676 = vld [vmem:[#allocation2] sm:$0xff]
    %v677 = vld [vmem:[#allocation2 + $0x8] sm:$0xff]
    %v678 = vld [vmem:[#allocation2 + $0x10] sm:$0xff]
    %v679 = vld [vmem:[#allocation2 + $0x18] sm:$0xff]
    %v680 = vld [vmem:[#allocation2 + $0x20] sm:$0xff]
    %v681 = vld [vmem:[#allocation2 + $0x28] sm:$0xff]
    %v682 = vld [vmem:[#allocation2 + $0x30] sm:$0xff]
    %v683 = vld [vmem:[#allocation2 + $0x38] sm:$0xff]
    %v684 = vld [vmem:[#allocation2 + $0x40] sm:$0xff]
    %v685 = vld [vmem:[#allocation2 + $0x48] sm:$0xff]
    %v686 = vld [vmem:[#allocation2 + $0x50] sm:$0xff]
    %v687 = vld [vmem:[#allocation2 + $0x58] sm:$0xff]
    %v688 = vld [vmem:[#allocation2 + $0x60] sm:$0xff]
    %v689 = vld [vmem:[#allocation2 + $0x68] sm:$0xff]
    %v690 = vld [vmem:[#allocation2 + $0x70] sm:$0xff]
    %v691 = vld [vmem:[#allocation2 + $0x78] sm:$0xff]
    %v692 = vld [vmem:[#allocation2 + $0x80] sm:$0xff]
    %v693 = vld [vmem:[#allocation2 + $0x88] sm:$0xff]
    %v694 = vld [vmem:[#allocation2 + $0x90] sm:$0xff]
    %v695 = vld [vmem:[#allocation2 + $0x98] sm:$0xff]
    %v696 = vld [vmem:[#allocation2 + $0xa0] sm:$0xff]
    %v697 = vld [vmem:[#allocation2 + $0xa8] sm:$0xff]
    %v698 = vld [vmem:[#allocation2 + $0xb0] sm:$0xff]
    %v699 = vld [vmem:[#allocation2 + $0xb8] sm:$0xff]
    %v700 = vld [vmem:[#allocation2 + $0xc0] sm:$0xff]
    %v701 = vld [vmem:[#allocation2 + $0xc8] sm:$0xff]
    %v702 = vld [vmem:[#allocation2 + $0xd0] sm:$0xff]
    %v703 = vld [vmem:[#allocation2 + $0xd8] sm:$0xff]
    %v704 = vld [vmem:[#allocation2 + $0xe0] sm:$0xff]
    %v705 = vld [vmem:[#allocation2 + $0xe8] sm:$0xff]
    %v706 = vld [vmem:[#allocation2 + $0xf0] sm:$0xff]
    %v707 = vld [vmem:[#allocation2 + $0xf8] sm:$0xff]
    %v708 = vld [vmem:[#allocation2 + $0x100] sm:$0xff]
    %v709 = vld [vmem:[#allocation2 + $0x108] sm:$0xff]
    %v710 = vld [vmem:[#allocation2 + $0x110] sm:$0xff]
    %v711 = vld [vmem:[#allocation2 + $0x118] sm:$0xff]
    %v712 = vld [vmem:[#allocation2 + $0x120] sm:$0xff]
    %v713 = vld [vmem:[#allocation2 + $0x128] sm:$0xff]
    %v714 = vld [vmem:[#allocation2 + $0x130] sm:$0xff]
    %v715 = vld [vmem:[#allocation2 + $0x138] sm:$0xff]
    %v716 = vld [vmem:[#allocation2 + $0x140] sm:$0xff]
    %v717 = vld [vmem:[#allocation2 + $0x148] sm:$0xff]
    %v718 = vld [vmem:[#allocation2 + $0x150] sm:$0xff]
    %v719 = vld [vmem:[#allocation2 + $0x158] sm:$0xff]
    %v720 = vld [vmem:[#allocation2 + $0x160] sm:$0xff]
    %v721 = vld [vmem:[#allocation2 + $0x168] sm:$0xff]
    %v722 = vld [vmem:[#allocation2 + $0x170] sm:$0xff]
    %v723 = vld [vmem:[#allocation2 + $0x178] sm:$0xff]
    %v724 = vld [vmem:[%s6] sm:$0x3]
    %v726 = vperm.slane %v724, 0
    %v727 = vperm.slane %v724, 1
    %v778 = vunpack.c.l.b16 %v676
    %v779 = vunpack.c.h.b16 %v676
    %v780 = vunpack.c.l.b16 %v677
    %v781 = vunpack.c.h.b16 %v677
    %v782 = vunpack.c.l.b16 %v678
    %v783 = vunpack.c.h.b16 %v678
    %v784 = vunpack.c.l.b16 %v679
    %v785 = vunpack.c.h.b16 %v679
    %v786 = vunpack.c.l.b16 %v680
    %v787 = vunpack.c.h.b16 %v680
    %v788 = vunpack.c.l.b16 %v681
    %v789 = vunpack.c.h.b16 %v681
    %v790 = vunpack.c.l.b16 %v682
    %v791 = vunpack.c.h.b16 %v682
    %v792 = vunpack.c.l.b16 %v683
    %v793 = vunpack.c.h.b16 %v683
    %v794 = vunpack.c.l.b16 %v684
    %v795 = vunpack.c.h.b16 %v684
    %v796 = vunpack.c.l.b16 %v685
    %v797 = vunpack.c.h.b16 %v685
    %v798 = vunpack.c.l.b16 %v686
    %v799 = vunpack.c.h.b16 %v686
    %v800 = vunpack.c.l.b16 %v687
    %v801 = vunpack.c.h.b16 %v687
    %v802 = vunpack.c.l.b16 %v688
    %v803 = vunpack.c.h.b16 %v688
    %v804 = vunpack.c.l.b16 %v689
    %v805 = vunpack.c.h.b16 %v689
    %v806 = vunpack.c.l.b16 %v690
    %v807 = vunpack.c.h.b16 %v690
    %v808 = vunpack.c.l.b16 %v691
    %v809 = vunpack.c.h.b16 %v691
    %v810 = vunpack.c.l.b16 %v692
    %v811 = vunpack.c.h.b16 %v692
    %v812 = vunpack.c.l.b16 %v693
    %v813 = vunpack.c.h.b16 %v693
    %v814 = vunpack.c.l.b16 %v694
    %v815 = vunpack.c.h.b16 %v694
    %v816 = vunpack.c.l.b16 %v695
    %v817 = vunpack.c.h.b16 %v695
    %v818 = vunpack.c.l.b16 %v696
    %v819 = vunpack.c.h.b16 %v696
    %v820 = vunpack.c.l.b16 %v697
    %v821 = vunpack.c.h.b16 %v697
    %v822 = vunpack.c.l.b16 %v698
    %v823 = vunpack.c.h.b16 %v698
    %v824 = vunpack.c.l.b16 %v699
    %v825 = vunpack.c.h.b16 %v699
    %v826 = vunpack.c.l.b16 %v700
    %v827 = vunpack.c.h.b16 %v700
    %v828 = vunpack.c.l.b16 %v701
    %v829 = vunpack.c.h.b16 %v701
    %v830 = vunpack.c.l.b16 %v702
    %v831 = vunpack.c.h.b16 %v702
    %v832 = vunpack.c.l.b16 %v703
    %v833 = vunpack.c.h.b16 %v703
    %v834 = vunpack.c.l.b16 %v704
    %v835 = vunpack.c.h.b16 %v704
    %v836 = vunpack.c.l.b16 %v705
    %v837 = vunpack.c.h.b16 %v705
    %v838 = vunpack.c.l.b16 %v706
    %v839 = vunpack.c.h.b16 %v706
    %v840 = vunpack.c.l.b16 %v707
    %v841 = vunpack.c.h.b16 %v707
    %v842 = vunpack.c.l.b16 %v708
    %v843 = vunpack.c.h.b16 %v708
    %v844 = vunpack.c.l.b16 %v709
    %v845 = vunpack.c.h.b16 %v709
    %v846 = vunpack.c.l.b16 %v710
    %v847 = vunpack.c.h.b16 %v710
    %v848 = vunpack.c.l.b16 %v711
    %v849 = vunpack.c.h.b16 %v711
    %v850 = vunpack.c.l.b16 %v712
    %v851 = vunpack.c.h.b16 %v712
    %v852 = vunpack.c.l.b16 %v713
    %v853 = vunpack.c.h.b16 %v713
    %v854 = vunpack.c.l.b16 %v714
    %v855 = vunpack.c.h.b16 %v714
    %v856 = vunpack.c.l.b16 %v715
    %v857 = vunpack.c.h.b16 %v715
    %v858 = vunpack.c.l.b16 %v716
    %v859 = vunpack.c.h.b16 %v716
    %v860 = vunpack.c.l.b16 %v717
    %v861 = vunpack.c.h.b16 %v717
    %v862 = vunpack.c.l.b16 %v718
    %v863 = vunpack.c.h.b16 %v718
    %v864 = vunpack.c.l.b16 %v719
    %v865 = vunpack.c.h.b16 %v719
    %v866 = vunpack.c.l.b16 %v720
    %v867 = vunpack.c.h.b16 %v720
    %v868 = vunpack.c.l.b16 %v721
    %v869 = vunpack.c.h.b16 %v721
    %v870 = vunpack.c.l.b16 %v722
    %v871 = vunpack.c.h.b16 %v722
    %v872 = vunpack.c.l.b16 %v723
    %v873 = vunpack.c.h.b16 %v723
    %v874 = vpack.c.b16 %v780, %v778
    %v875 = vpack.c.b16 %v781, %v779
    %v876 = vpack.c.b16 %v784, %v782
    %v877 = vpack.c.b16 %v785, %v783
    %v878 = vpack.c.b16 %v788, %v786
    %v879 = vpack.c.b16 %v789, %v787
    %v880 = vpack.c.b16 %v792, %v790
    %v881 = vpack.c.b16 %v793, %v791
    %v882 = vpack.c.b16 %v796, %v794
    %v883 = vpack.c.b16 %v797, %v795
    %v884 = vpack.c.b16 %v800, %v798
    %v885 = vpack.c.b16 %v801, %v799
    %v886 = vpack.c.b16 %v804, %v802
    %v887 = vpack.c.b16 %v805, %v803
    %v888 = vpack.c.b16 %v808, %v806
    %v889 = vpack.c.b16 %v809, %v807
    %v890 = vpack.c.b16 %v812, %v810
    %v891 = vpack.c.b16 %v813, %v811
    %v892 = vpack.c.b16 %v816, %v814
    %v893 = vpack.c.b16 %v817, %v815
    %v894 = vpack.c.b16 %v820, %v818
    %v895 = vpack.c.b16 %v821, %v819
    %v896 = vpack.c.b16 %v824, %v822
    %v897 = vpack.c.b16 %v825, %v823
    %v898 = vpack.c.b16 %v828, %v826
    %v899 = vpack.c.b16 %v829, %v827
    %v900 = vpack.c.b16 %v832, %v830
    %v901 = vpack.c.b16 %v833, %v831
    %v902 = vpack.c.b16 %v836, %v834
    %v903 = vpack.c.b16 %v837, %v835
    %v904 = vpack.c.b16 %v840, %v838
    %v905 = vpack.c.b16 %v841, %v839
    %v906 = vpack.c.b16 %v844, %v842
    %v907 = vpack.c.b16 %v845, %v843
    %v908 = vpack.c.b16 %v848, %v846
    %v909 = vpack.c.b16 %v849, %v847
    %v910 = vpack.c.b16 %v852, %v850
    %v911 = vpack.c.b16 %v853, %v851
    %v912 = vpack.c.b16 %v856, %v854
    %v913 = vpack.c.b16 %v857, %v855
    %v914 = vpack.c.b16 %v860, %v858
    %v915 = vpack.c.b16 %v861, %v859
    %v916 = vpack.c.b16 %v864, %v862
    %v917 = vpack.c.b16 %v865, %v863
    %v918 = vpack.c.b16 %v868, %v866
    %v919 = vpack.c.b16 %v869, %v867
    %v920 = vpack.c.b16 %v872, %v870
    %v921 = vpack.c.b16 %v873, %v871
    %970 = vmatpush.bf16.msra.mxu0 %v888
    %971 = vmatpush.bf16.msra.mxu0 %v886
    %972 = vmatpush.bf16.msra.mxu0 %v884
    %973 = vmatpush.bf16.msra.mxu0 %v882
    %974 = vmatpush.bf16.msra.mxu0 %v880
    %975 = vmatpush.bf16.msra.mxu0 %v878
    %976 = vmatpush.bf16.msra.mxu0 %v876
    %977 = vmatpush.bf16.msra.mxu0 %v874
    %978 = vmatmul.bf16.gmra.mxu0 %v652
    %v979 = vpop.f32.mrf.mxu0
    %v980 = vadd.f32 %v726, %v979
    %v981 = vpop.f32.mrf.mxu0
    %v982 = vadd.f32 %v726, %v981
    %983 = vmatmul.bf16.gmra.mxu0 %v655
    %v984 = vpop.f32.mrf.mxu0
    %v985 = vadd.f32 %v726, %v984
    %v986 = vpop.f32.mrf.mxu0
    %v987 = vadd.f32 %v726, %v986
    %988 = vmatmul.bf16.gmra.mxu0 %v658
    %v989 = vpop.f32.mrf.mxu0
    %v990 = vadd.f32 %v726, %v989
    %v991 = vpop.f32.mrf.mxu0
    %v992 = vadd.f32 %v726, %v991
    %993 = vmatmul.bf16.gmra.mxu0 %v661
    %v994 = vpop.f32.mrf.mxu0
    %v995 = vadd.f32 %v726, %v994
    %v996 = vpop.f32.mrf.mxu0
    %v997 = vadd.f32 %v726, %v996
    %998 = vmatmul.bf16.gmra.mxu0 %v664
    %v999 = vpop.f32.mrf.mxu0
    %v1000 = vadd.f32 %v726, %v999
    %v1001 = vpop.f32.mrf.mxu0
    %v1002 = vadd.f32 %v726, %v1001
    %1003 = vmatmul.bf16.gmra.mxu0 %v667
    %v1004 = vpop.f32.mrf.mxu0
    %v1005 = vadd.f32 %v726, %v1004
    %v1006 = vpop.f32.mrf.mxu0
    %v1007 = vadd.f32 %v726, %v1006
    %1008 = vmatmul.bf16.gmra.mxu0 %v670
    %v1009 = vpop.f32.mrf.mxu0
    %v1010 = vadd.f32 %v726, %v1009
    %v1011 = vpop.f32.mrf.mxu0
    %v1012 = vadd.f32 %v726, %v1011
    %1013 = vmatmul.bf16.gmra.mxu0 %v673
    %v1014 = vpop.f32.mrf.mxu0
    %v1015 = vadd.f32 %v726, %v1014
    %v1016 = vpop.f32.mrf.mxu0
    %v1017 = vadd.f32 %v726, %v1016
    %1018 = vdwg.mxu0
    %1019 = vmatpush.bf16.msra.mxu0 %v904
    %1020 = vmatpush.bf16.msra.mxu0 %v902
    %1021 = vmatpush.bf16.msra.mxu0 %v900
    %1022 = vmatpush.bf16.msra.mxu0 %v898
    %1023 = vmatpush.bf16.msra.mxu0 %v896
    %1024 = vmatpush.bf16.msra.mxu0 %v894
    %1025 = vmatpush.bf16.msra.mxu0 %v892
    %1026 = vmatpush.bf16.msra.mxu0 %v890
    %1027 = vmatmul.bf16.gmra.mxu0 %v653
    %v1028 = vpop.f32.mrf.mxu0
    %v1029 = vadd.f32 %v980, %v1028
    %v1030 = vpop.f32.mrf.mxu0
    %v1031 = vadd.f32 %v982, %v1030
    %1032 = vmatmul.bf16.gmra.mxu0 %v656
    %v1033 = vpop.f32.mrf.mxu0
    %v1034 = vadd.f32 %v985, %v1033
    %v1035 = vpop.f32.mrf.mxu0
    %v1036 = vadd.f32 %v987, %v1035
    %1037 = vmatmul.bf16.gmra.mxu0 %v659
    %v1038 = vpop.f32.mrf.mxu0
    %v1039 = vadd.f32 %v990, %v1038
    %v1040 = vpop.f32.mrf.mxu0
    %v1041 = vadd.f32 %v992, %v1040
    %1042 = vmatmul.bf16.gmra.mxu0 %v662
    %v1043 = vpop.f32.mrf.mxu0
    %v1044 = vadd.f32 %v995, %v1043
    %v1045 = vpop.f32.mrf.mxu0
    %v1046 = vadd.f32 %v997, %v1045
    %1047 = vmatmul.bf16.gmra.mxu0 %v665
    %v1048 = vpop.f32.mrf.mxu0
    %v1049 = vadd.f32 %v1000, %v1048
    %v1050 = vpop.f32.mrf.mxu0
    %v1051 = vadd.f32 %v1002, %v1050
    %1052 = vmatmul.bf16.gmra.mxu0 %v668
    %v1053 = vpop.f32.mrf.mxu0
    %v1054 = vadd.f32 %v1005, %v1053
    %v1055 = vpop.f32.mrf.mxu0
    %v1056 = vadd.f32 %v1007, %v1055
    %1057 = vmatmul.bf16.gmra.mxu0 %v671
    %v1058 = vpop.f32.mrf.mxu0
    %v1059 = vadd.f32 %v1010, %v1058
    %v1060 = vpop.f32.mrf.mxu0
    %v1061 = vadd.f32 %v1012, %v1060
    %1062 = vmatmul.bf16.gmra.mxu0 %v674
    %v1063 = vpop.f32.mrf.mxu0
    %v1064 = vadd.f32 %v1015, %v1063
    %v1065 = vpop.f32.mrf.mxu0
    %v1066 = vadd.f32 %v1017, %v1065
    %1067 = vdwg.mxu0
    %1068 = vmatpush.bf16.msra.mxu0 %v920
    %1069 = vmatpush.bf16.msra.mxu0 %v918
    %1070 = vmatpush.bf16.msra.mxu0 %v916
    %1071 = vmatpush.bf16.msra.mxu0 %v914
    %1072 = vmatpush.bf16.msra.mxu0 %v912
    %1073 = vmatpush.bf16.msra.mxu0 %v910
    %1074 = vmatpush.bf16.msra.mxu0 %v908
    %1075 = vmatpush.bf16.msra.mxu0 %v906
    %1076 = vmatmul.bf16.gmra.mxu0 %v654
    %v1077 = vpop.f32.mrf.mxu0
    %v1078 = vadd.f32 %v1029, %v1077
    %v1079 = vpop.f32.mrf.mxu0
    %v1080 = vadd.f32 %v1031, %v1079
    %1081 = vmatmul.bf16.gmra.mxu0 %v657
    %v1082 = vpop.f32.mrf.mxu0
    %v1083 = vadd.f32 %v1034, %v1082
    %v1084 = vpop.f32.mrf.mxu0
    %v1085 = vadd.f32 %v1036, %v1084
    %1086 = vmatmul.bf16.gmra.mxu0 %v660
    %v1087 = vpop.f32.mrf.mxu0
    %v1088 = vadd.f32 %v1039, %v1087
    %v1089 = vpop.f32.mrf.mxu0
    %v1090 = vadd.f32 %v1041, %v1089
    %1091 = vmatmul.bf16.gmra.mxu0 %v663
    %v1092 = vpop.f32.mrf.mxu0
    %v1093 = vadd.f32 %v1044, %v1092
    %v1094 = vpop.f32.mrf.mxu0
    %v1095 = vadd.f32 %v1046, %v1094
    %1096 = vmatmul.bf16.gmra.mxu0 %v666
    %v1097 = vpop.f32.mrf.mxu0
    %v1098 = vadd.f32 %v1049, %v1097
    %v1099 = vpop.f32.mrf.mxu0
    %v1100 = vadd.f32 %v1051, %v1099
    %1101 = vmatmul.bf16.gmra.mxu0 %v669
    %v1102 = vpop.f32.mrf.mxu0
    %v1103 = vadd.f32 %v1054, %v1102
    %v1104 = vpop.f32.mrf.mxu0
    %v1105 = vadd.f32 %v1056, %v1104
    %1106 = vmatmul.bf16.gmra.mxu0 %v672
    %v1107 = vpop.f32.mrf.mxu0
    %v1108 = vadd.f32 %v1059, %v1107
    %v1109 = vpop.f32.mrf.mxu0
    %v1110 = vadd.f32 %v1061, %v1109
    %1111 = vmatmul.bf16.gmra.mxu0 %v675
    %v1112 = vpop.f32.mrf.mxu0
    %v1113 = vadd.f32 %v1064, %v1112
    %v1114 = vpop.f32.mrf.mxu0
    %v1115 = vadd.f32 %v1066, %v1114
    %1116 = vdwg.mxu0
    %1117 = vmatpush.bf16.msra.mxu0 %v889
    %1118 = vmatpush.bf16.msra.mxu0 %v887
    %1119 = vmatpush.bf16.msra.mxu0 %v885
    %1120 = vmatpush.bf16.msra.mxu0 %v883
    %1121 = vmatpush.bf16.msra.mxu0 %v881
    %1122 = vmatpush.bf16.msra.mxu0 %v879
    %1123 = vmatpush.bf16.msra.mxu0 %v877
    %1124 = vmatpush.bf16.msra.mxu0 %v875
    %1125 = vmatmul.bf16.gmra.mxu0 %v652
    %v1126 = vpop.f32.mrf.mxu0
    %v1127 = vadd.f32 %v727, %v1126
    %v1128 = vpop.f32.mrf.mxu0
    %v1129 = vadd.f32 %v727, %v1128
    %1130 = vmatmul.bf16.gmra.mxu0 %v655
    %v1131 = vpop.f32.mrf.mxu0
    %v1132 = vadd.f32 %v727, %v1131
    %v1133 = vpop.f32.mrf.mxu0
    %v1134 = vadd.f32 %v727, %v1133
    %1135 = vmatmul.bf16.gmra.mxu0 %v658
    %v1136 = vpop.f32.mrf.mxu0
    %v1137 = vadd.f32 %v727, %v1136
    %v1138 = vpop.f32.mrf.mxu0
    %v1139 = vadd.f32 %v727, %v1138
    %1140 = vmatmul.bf16.gmra.mxu0 %v661
    %v1141 = vpop.f32.mrf.mxu0
    %v1142 = vadd.f32 %v727, %v1141
    %v1143 = vpop.f32.mrf.mxu0
    %v1144 = vadd.f32 %v727, %v1143
    %1145 = vmatmul.bf16.gmra.mxu0 %v664
    %v1146 = vpop.f32.mrf.mxu0
    %v1147 = vadd.f32 %v727, %v1146
    %v1148 = vpop.f32.mrf.mxu0
    %v1149 = vadd.f32 %v727, %v1148
    %1150 = vmatmul.bf16.gmra.mxu0 %v667
    %v1151 = vpop.f32.mrf.mxu0
    %v1152 = vadd.f32 %v727, %v1151
    %v1153 = vpop.f32.mrf.mxu0
    %v1154 = vadd.f32 %v727, %v1153
    %1155 = vmatmul.bf16.gmra.mxu0 %v670
    %v1156 = vpop.f32.mrf.mxu0
    %v1157 = vadd.f32 %v727, %v1156
    %v1158 = vpop.f32.mrf.mxu0
    %v1159 = vadd.f32 %v727, %v1158
    %1160 = vmatmul.bf16.gmra.mxu0 %v673
    %v1161 = vpop.f32.mrf.mxu0
    %v1162 = vadd.f32 %v727, %v1161
    %v1163 = vpop.f32.mrf.mxu0
    %v1164 = vadd.f32 %v727, %v1163
    %1165 = vdwg.mxu0
    %1166 = vmatpush.bf16.msra.mxu0 %v905
    %1167 = vmatpush.bf16.msra.mxu0 %v903
    %1168 = vmatpush.bf16.msra.mxu0 %v901
    %1169 = vmatpush.bf16.msra.mxu0 %v899
    %1170 = vmatpush.bf16.msra.mxu0 %v897
    %1171 = vmatpush.bf16.msra.mxu0 %v895
    %1172 = vmatpush.bf16.msra.mxu0 %v893
    %1173 = vmatpush.bf16.msra.mxu0 %v891
    %1174 = vmatmul.bf16.gmra.mxu0 %v653
    %v1175 = vpop.f32.mrf.mxu0
    %v1176 = vadd.f32 %v1127, %v1175
    %v1177 = vpop.f32.mrf.mxu0
    %v1178 = vadd.f32 %v1129, %v1177
    %1179 = vmatmul.bf16.gmra.mxu0 %v656
    %v1180 = vpop.f32.mrf.mxu0
    %v1181 = vadd.f32 %v1132, %v1180
    %v1182 = vpop.f32.mrf.mxu0
    %v1183 = vadd.f32 %v1134, %v1182
    %1184 = vmatmul.bf16.gmra.mxu0 %v659
    %v1185 = vpop.f32.mrf.mxu0
    %v1186 = vadd.f32 %v1137, %v1185
    %v1187 = vpop.f32.mrf.mxu0
    %v1188 = vadd.f32 %v1139, %v1187
    %1189 = vmatmul.bf16.gmra.mxu0 %v662
    %v1190 = vpop.f32.mrf.mxu0
    %v1191 = vadd.f32 %v1142, %v1190
    %v1192 = vpop.f32.mrf.mxu0
    %v1193 = vadd.f32 %v1144, %v1192
    %1194 = vmatmul.bf16.gmra.mxu0 %v665
    %v1195 = vpop.f32.mrf.mxu0
    %v1196 = vadd.f32 %v1147, %v1195
    %v1197 = vpop.f32.mrf.mxu0
    %v1198 = vadd.f32 %v1149, %v1197
    %1199 = vmatmul.bf16.gmra.mxu0 %v668
    %v1200 = vpop.f32.mrf.mxu0
    %v1201 = vadd.f32 %v1152, %v1200
    %v1202 = vpop.f32.mrf.mxu0
    %v1203 = vadd.f32 %v1154, %v1202
    %1204 = vmatmul.bf16.gmra.mxu0 %v671
    %v1205 = vpop.f32.mrf.mxu0
    %v1206 = vadd.f32 %v1157, %v1205
    %v1207 = vpop.f32.mrf.mxu0
    %v1208 = vadd.f32 %v1159, %v1207
    %1209 = vmatmul.bf16.gmra.mxu0 %v674
    %v1210 = vpop.f32.mrf.mxu0
    %v1211 = vadd.f32 %v1162, %v1210
    %v1212 = vpop.f32.mrf.mxu0
    %v1213 = vadd.f32 %v1164, %v1212
    %1214 = vdwg.mxu0
    %1215 = vmatpush.bf16.msra.mxu0 %v921
    %1216 = vmatpush.bf16.msra.mxu0 %v919
    %1217 = vmatpush.bf16.msra.mxu0 %v917
    %1218 = vmatpush.bf16.msra.mxu0 %v915
    %1219 = vmatpush.bf16.msra.mxu0 %v913
    %1220 = vmatpush.bf16.msra.mxu0 %v911
    %1221 = vmatpush.bf16.msra.mxu0 %v909
    %1222 = vmatpush.bf16.msra.mxu0 %v907
    %1223 = vmatmul.bf16.gmra.mxu0 %v654
    %v1224 = vpop.f32.mrf.mxu0
    %v1225 = vadd.f32 %v1176, %v1224
    %v1226 = vpop.f32.mrf.mxu0
    %v1227 = vadd.f32 %v1178, %v1226
    %1228 = vmatmul.bf16.gmra.mxu0 %v657
    %v1229 = vpop.f32.mrf.mxu0
    %v1230 = vadd.f32 %v1181, %v1229
    %v1231 = vpop.f32.mrf.mxu0
    %v1232 = vadd.f32 %v1183, %v1231
    %1233 = vmatmul.bf16.gmra.mxu0 %v660
    %v1234 = vpop.f32.mrf.mxu0
    %v1235 = vadd.f32 %v1186, %v1234
    %v1236 = vpop.f32.mrf.mxu0
    %v1237 = vadd.f32 %v1188, %v1236
    %1238 = vmatmul.bf16.gmra.mxu0 %v663
    %v1239 = vpop.f32.mrf.mxu0
    %v1240 = vadd.f32 %v1191, %v1239
    %v1241 = vpop.f32.mrf.mxu0
    %v1242 = vadd.f32 %v1193, %v1241
    %1243 = vmatmul.bf16.gmra.mxu0 %v666
    %v1244 = vpop.f32.mrf.mxu0
    %v1245 = vadd.f32 %v1196, %v1244
    %v1246 = vpop.f32.mrf.mxu0
    %v1247 = vadd.f32 %v1198, %v1246
    %1248 = vmatmul.bf16.gmra.mxu0 %v669
    %v1249 = vpop.f32.mrf.mxu0
    %v1250 = vadd.f32 %v1201, %v1249
    %v1251 = vpop.f32.mrf.mxu0
    %v1252 = vadd.f32 %v1203, %v1251
    %1253 = vmatmul.bf16.gmra.mxu0 %v672
    %v1254 = vpop.f32.mrf.mxu0
    %v1255 = vadd.f32 %v1206, %v1254
    %v1256 = vpop.f32.mrf.mxu0
    %v1257 = vadd.f32 %v1208, %v1256
    %1258 = vmatmul.bf16.gmra.mxu0 %v675
    %v1259 = vpop.f32.mrf.mxu0
    %v1260 = vadd.f32 %v1211, %v1259
    %v1261 = vpop.f32.mrf.mxu0
    %v1262 = vadd.f32 %v1213, %v1261
    %1263 = vdwg.mxu0
    %v1264 = vmax.f32 %v1078, 0.0
    %v1265 = vmax.f32 %v1225, 0.0
    %v1266 = vmax.f32 %v1080, 0.0
    %v1267 = vmax.f32 %v1227, 0.0
    %v1268 = vmax.f32 %v1083, 0.0
    %v1269 = vmax.f32 %v1230, 0.0
    %v1270 = vmax.f32 %v1085, 0.0
    %v1271 = vmax.f32 %v1232, 0.0
    %v1272 = vmax.f32 %v1088, 0.0
    %v1273 = vmax.f32 %v1235, 0.0
    %v1274 = vmax.f32 %v1090, 0.0
    %v1275 = vmax.f32 %v1237, 0.0
    %v1276 = vmax.f32 %v1093, 0.0
    %v1277 = vmax.f32 %v1240, 0.0
    %v1278 = vmax.f32 %v1095, 0.0
    %v1279 = vmax.f32 %v1242, 0.0
    %v1280 = vmax.f32 %v1098, 0.0
    %v1281 = vmax.f32 %v1245, 0.0
    %v1282 = vmax.f32 %v1100, 0.0
    %v1283 = vmax.f32 %v1247, 0.0
    %v1284 = vmax.f32 %v1103, 0.0
    %v1285 = vmax.f32 %v1250, 0.0
    %v1286 = vmax.f32 %v1105, 0.0
    %v1287 = vmax.f32 %v1252, 0.0
    %v1288 = vmax.f32 %v1108, 0.0
    %v1289 = vmax.f32 %v1255, 0.0
    %v1290 = vmax.f32 %v1110, 0.0
    %v1291 = vmax.f32 %v1257, 0.0
    %v1292 = vmax.f32 %v1113, 0.0
    %v1293 = vmax.f32 %v1260, 0.0
    %v1294 = vmax.f32 %v1115, 0.0
    %v1295 = vmax.f32 %v1262, 0.0
    %v1296 = vpack.c.bf16 %v1266, %v1264
    %v1297 = vpack.c.bf16 %v1267, %v1265
    %v1298 = vpack.c.bf16 %v1270, %v1268
    %v1299 = vpack.c.bf16 %v1271, %v1269
    %v1300 = vpack.c.bf16 %v1274, %v1272
    %v1301 = vpack.c.bf16 %v1275, %v1273
    %v1302 = vpack.c.bf16 %v1278, %v1276
    %v1303 = vpack.c.bf16 %v1279, %v1277
    %v1304 = vpack.c.bf16 %v1282, %v1280
    %v1305 = vpack.c.bf16 %v1283, %v1281
    %v1306 = vpack.c.bf16 %v1286, %v1284
    %v1307 = vpack.c.bf16 %v1287, %v1285
    %v1308 = vpack.c.bf16 %v1290, %v1288
    %v1309 = vpack.c.bf16 %v1291, %v1289
    %v1310 = vpack.c.bf16 %v1294, %v1292
    %v1311 = vpack.c.bf16 %v1295, %v1293
    %v1312 = vld [vmem:[%s7] sm:$0xf]
    %v1313 = vld [vmem:[%s7 + $0x4] sm:$0xf]
    %v1314 = vld [vmem:[%s7 + $0x8] sm:$0xf]
    %v1315 = vld [vmem:[%s7 + $0xc] sm:$0xf]
    %v1316 = vld [vmem:[%s7 + $0x10] sm:$0xf]
    %v1317 = vld [vmem:[%s7 + $0x14] sm:$0xf]
    %v1318 = vld [vmem:[%s7 + $0x18] sm:$0xf]
    %v1319 = vld [vmem:[%s7 + $0x1c] sm:$0xf]
    %v1320 = vld [vmem:[%s7 + $0x20] sm:$0xf]
    %v1321 = vld [vmem:[%s7 + $0x24] sm:$0xf]
    %v1322 = vld [vmem:[%s7 + $0x28] sm:$0xf]
    %v1323 = vld [vmem:[%s7 + $0x2c] sm:$0xf]
    %v1324 = vld [vmem:[%s7 + $0x30] sm:$0xf]
    %v1325 = vld [vmem:[%s7 + $0x34] sm:$0xf]
    %v1326 = vld [vmem:[%s7 + $0x38] sm:$0xf]
    %v1327 = vld [vmem:[%s7 + $0x3c] sm:$0xf]
    %v1328 = vld [vmem:[%s7 + $0x40] sm:$0xf]
    %v1329 = vld [vmem:[%s7 + $0x44] sm:$0xf]
    %v1330 = vld [vmem:[%s7 + $0x48] sm:$0xf]
    %v1331 = vld [vmem:[%s7 + $0x4c] sm:$0xf]
    %v1332 = vld [vmem:[%s7 + $0x50] sm:$0xf]
    %v1333 = vld [vmem:[%s7 + $0x54] sm:$0xf]
    %v1334 = vld [vmem:[%s7 + $0x58] sm:$0xf]
    %v1335 = vld [vmem:[%s7 + $0x5c] sm:$0xf]
    %v1336 = vld [vmem:[%s7 + $0x60] sm:$0xf]
    %v1337 = vld [vmem:[%s7 + $0x64] sm:$0xf]
    %v1338 = vld [vmem:[%s7 + $0x68] sm:$0xf]
    %v1339 = vld [vmem:[%s7 + $0x6c] sm:$0xf]
    %v1340 = vld [vmem:[%s7 + $0x70] sm:$0xf]
    %v1341 = vld [vmem:[%s7 + $0x74] sm:$0xf]
    %v1342 = vld [vmem:[%s7 + $0x78] sm:$0xf]
    %v1343 = vld [vmem:[%s7 + $0x7c] sm:$0xf]
    %v1344 = vld [vmem:[%s8] sm:$0x1]
    %v1346 = vperm.slane %v1344, 0
    %v1380 = vunpack.c.l.b16 %v1312
    %v1381 = vunpack.c.l.b16 %v1313
    %v1382 = vunpack.c.l.b16 %v1314
    %v1383 = vunpack.c.l.b16 %v1315
    %v1384 = vunpack.c.l.b16 %v1316
    %v1385 = vunpack.c.l.b16 %v1317
    %v1386 = vunpack.c.l.b16 %v1318
    %v1387 = vunpack.c.l.b16 %v1319
    %v1388 = vunpack.c.l.b16 %v1320
    %v1389 = vunpack.c.l.b16 %v1321
    %v1390 = vunpack.c.l.b16 %v1322
    %v1391 = vunpack.c.l.b16 %v1323
    %v1392 = vunpack.c.l.b16 %v1324
    %v1393 = vunpack.c.l.b16 %v1325
    %v1394 = vunpack.c.l.b16 %v1326
    %v1395 = vunpack.c.l.b16 %v1327
    %v1396 = vunpack.c.l.b16 %v1328
    %v1397 = vunpack.c.l.b16 %v1329
    %v1398 = vunpack.c.l.b16 %v1330
    %v1399 = vunpack.c.l.b16 %v1331
    %v1400 = vunpack.c.l.b16 %v1332
    %v1401 = vunpack.c.l.b16 %v1333
    %v1402 = vunpack.c.l.b16 %v1334
    %v1403 = vunpack.c.l.b16 %v1335
    %v1404 = vunpack.c.l.b16 %v1336
    %v1405 = vunpack.c.l.b16 %v1337
    %v1406 = vunpack.c.l.b16 %v1338
    %v1407 = vunpack.c.l.b16 %v1339
    %v1408 = vunpack.c.l.b16 %v1340
    %v1409 = vunpack.c.l.b16 %v1341
    %v1410 = vunpack.c.l.b16 %v1342
    %v1411 = vunpack.c.l.b16 %v1343
    %v1412 = vpack.c.b16 %v1381, %v1380
    %v1413 = vpack.c.b16 %v1383, %v1382
    %v1414 = vpack.c.b16 %v1385, %v1384
    %v1415 = vpack.c.b16 %v1387, %v1386
    %v1416 = vpack.c.b16 %v1389, %v1388
    %v1417 = vpack.c.b16 %v1391, %v1390
    %v1418 = vpack.c.b16 %v1393, %v1392
    %v1419 = vpack.c.b16 %v1395, %v1394
    %v1420 = vpack.c.b16 %v1397, %v1396
    %v1421 = vpack.c.b16 %v1399, %v1398
    %v1422 = vpack.c.b16 %v1401, %v1400
    %v1423 = vpack.c.b16 %v1403, %v1402
    %v1424 = vpack.c.b16 %v1405, %v1404
    %v1425 = vpack.c.b16 %v1407, %v1406
    %v1426 = vpack.c.b16 %v1409, %v1408
    %v1427 = vpack.c.b16 %v1411, %v1410
    %1444 = vmatpush.bf16.msra.mxu0 %v1419
    %1445 = vmatpush.bf16.msra.mxu0 %v1418
    %1446 = vmatpush.bf16.msra.mxu0 %v1417
    %1447 = vmatpush.bf16.msra.mxu0 %v1416
    %1448 = vmatpush.bf16.msra.mxu0 %v1415
    %1449 = vmatpush.bf16.msra.mxu0 %v1414
    %1450 = vmatpush.bf16.msra.mxu0 %v1413
    %1451 = vmatpush.bf16.msra.mxu0 %v1412
    %1452 = vmatmul.bf16.gmra.mxu0 %v1296
    %v1453 = vpop.f32.mrf.mxu0
    %v1454 = vadd.f32 %v1346, %v1453
    %v1455 = vpop.f32.mrf.mxu0
    %v1456 = vadd.f32 %v1346, %v1455
    %1457 = vmatmul.bf16.gmra.mxu0 %v1298
    %v1458 = vpop.f32.mrf.mxu0
    %v1459 = vadd.f32 %v1346, %v1458
    %v1460 = vpop.f32.mrf.mxu0
    %v1461 = vadd.f32 %v1346, %v1460
    %1462 = vmatmul.bf16.gmra.mxu0 %v1300
    %v1463 = vpop.f32.mrf.mxu0
    %v1464 = vadd.f32 %v1346, %v1463
    %v1465 = vpop.f32.mrf.mxu0
    %v1466 = vadd.f32 %v1346, %v1465
    %1467 = vmatmul.bf16.gmra.mxu0 %v1302
    %v1468 = vpop.f32.mrf.mxu0
    %v1469 = vadd.f32 %v1346, %v1468
    %v1470 = vpop.f32.mrf.mxu0
    %v1471 = vadd.f32 %v1346, %v1470
    %1472 = vmatmul.bf16.gmra.mxu0 %v1304
    %v1473 = vpop.f32.mrf.mxu0
    %v1474 = vadd.f32 %v1346, %v1473
    %v1475 = vpop.f32.mrf.mxu0
    %v1476 = vadd.f32 %v1346, %v1475
    %1477 = vmatmul.bf16.gmra.mxu0 %v1306
    %v1478 = vpop.f32.mrf.mxu0
    %v1479 = vadd.f32 %v1346, %v1478
    %v1480 = vpop.f32.mrf.mxu0
    %v1481 = vadd.f32 %v1346, %v1480
    %1482 = vmatmul.bf16.gmra.mxu0 %v1308
    %v1483 = vpop.f32.mrf.mxu0
    %v1484 = vadd.f32 %v1346, %v1483
    %v1485 = vpop.f32.mrf.mxu0
    %v1486 = vadd.f32 %v1346, %v1485
    %1487 = vmatmul.bf16.gmra.mxu0 %v1310
    %v1488 = vpop.f32.mrf.mxu0
    %v1489 = vadd.f32 %v1346, %v1488
    %v1490 = vpop.f32.mrf.mxu0
    %v1491 = vadd.f32 %v1346, %v1490
    %1492 = vdwg.mxu0
    %1493 = vmatpush.bf16.msra.mxu0 %v1427
    %1494 = vmatpush.bf16.msra.mxu0 %v1426
    %1495 = vmatpush.bf16.msra.mxu0 %v1425
    %1496 = vmatpush.bf16.msra.mxu0 %v1424
    %1497 = vmatpush.bf16.msra.mxu0 %v1423
    %1498 = vmatpush.bf16.msra.mxu0 %v1422
    %1499 = vmatpush.bf16.msra.mxu0 %v1421
    %1500 = vmatpush.bf16.msra.mxu0 %v1420
    %1501 = vmatmul.bf16.gmra.mxu0 %v1297
    %v1502 = vpop.f32.mrf.mxu0
    %v1503 = vadd.f32 %v1454, %v1502
    %v1504 = vpop.f32.mrf.mxu0
    %v1505 = vadd.f32 %v1456, %v1504
    %1506 = vmatmul.bf16.gmra.mxu0 %v1299
    %v1507 = vpop.f32.mrf.mxu0
    %v1508 = vadd.f32 %v1459, %v1507
    %v1509 = vpop.f32.mrf.mxu0
    %v1510 = vadd.f32 %v1461, %v1509
    %1511 = vmatmul.bf16.gmra.mxu0 %v1301
    %v1512 = vpop.f32.mrf.mxu0
    %v1513 = vadd.f32 %v1464, %v1512
    %v1514 = vpop.f32.mrf.mxu0
    %v1515 = vadd.f32 %v1466, %v1514
    %1516 = vmatmul.bf16.gmra.mxu0 %v1303
    %v1517 = vpop.f32.mrf.mxu0
    %v1518 = vadd.f32 %v1469, %v1517
    %v1519 = vpop.f32.mrf.mxu0
    %v1520 = vadd.f32 %v1471, %v1519
    %1521 = vmatmul.bf16.gmra.mxu0 %v1305
    %v1522 = vpop.f32.mrf.mxu0
    %v1523 = vadd.f32 %v1474, %v1522
    %v1524 = vpop.f32.mrf.mxu0
    %v1525 = vadd.f32 %v1476, %v1524
    %1526 = vmatmul.bf16.gmra.mxu0 %v1307
    %v1527 = vpop.f32.mrf.mxu0
    %v1528 = vadd.f32 %v1479, %v1527
    %v1529 = vpop.f32.mrf.mxu0
    %v1530 = vadd.f32 %v1481, %v1529
    %1531 = vmatmul.bf16.gmra.mxu0 %v1309
    %v1532 = vpop.f32.mrf.mxu0
    %v1533 = vadd.f32 %v1484, %v1532
    %v1534 = vpop.f32.mrf.mxu0
    %v1535 = vadd.f32 %v1486, %v1534
    %1536 = vmatmul.bf16.gmra.mxu0 %v1311
    %v1537 = vpop.f32.mrf.mxu0
    %v1538 = vadd.f32 %v1489, %v1537
    %v1539 = vpop.f32.mrf.mxu0
    %v1540 = vadd.f32 %v1491, %v1539
    %1541 = vdwg.mxu0
    %1542 = vxpose.xlu0.b32.start [1/16] %v1503, 128
    %1543 = vxpose.xlu0.b32.cont [2/16] %v1505, 128
    %1544 = vxpose.xlu0.b32.cont [3/16] %v1508, 128
    %1545 = vxpose.xlu0.b32.cont [4/16] %v1510, 128
    %1546 = vxpose.xlu0.b32.cont [5/16] %v1513, 128
    %1547 = vxpose.xlu0.b32.cont [6/16] %v1515, 128
    %1548 = vxpose.xlu0.b32.cont [7/16] %v1518, 128
    %1549 = vxpose.xlu0.b32.cont [8/16] %v1520, 128
    %1550 = vxpose.xlu0.b32.cont [9/16] %v1523, 128
    %1551 = vxpose.xlu0.b32.cont [10/16] %v1525, 128
    %1552 = vxpose.xlu0.b32.cont [11/16] %v1528, 128
    %1553 = vxpose.xlu0.b32.cont [12/16] %v1530, 128
    %1554 = vxpose.xlu0.b32.cont [13/16] %v1533, 128
    %1555 = vxpose.xlu0.b32.cont [14/16] %v1535, 128
    %1556 = vxpose.xlu0.b32.cont [15/16] %v1538, 128
    %1557 = vxpose.xlu0.b32.end [16/16] %v1540, 128
    %v1558 = vpop.trf.xlu0
    %v1559 = vpop.trf.xlu0
    %v1560 = vpop.trf.xlu0
    %v1561 = vpop.trf.xlu0
    %v1562 = vpop.trf.xlu0
    %v1563 = vpop.trf.xlu0
    %v1564 = vpop.trf.xlu0
    %v1565 = vpop.trf.xlu0
    %v1566 = vpop.trf.xlu0
    %v1567 = vpop.trf.xlu0
    %v1568 = vpop.trf.xlu0
    %v1569 = vpop.trf.xlu0
    %v1570 = vpop.trf.xlu0
    %v1571 = vpop.trf.xlu0
    %v1572 = vpop.trf.xlu0
    %v1573 = vpop.trf.xlu0
    %1574 = vst [vmem:[%s9] sm:$0x3] %v1558
    // Predicated region
    $region42: #{critic_forward.1} parent=1 // pred_check
      _
    $region43: #{critic_forward.1} parent=1 // pred_check_branch
      %1576 = sbr.rel (0) target = $region45
    $region44: #{critic_forward.1} parent=1 // pred_region
      _
    $region45: #{critic_forward.1} parent=1 // pred_fallthru
      _
    // Predicated region
    $region46: #{critic_forward.1} parent=1 // pred_check
      _
    $region47: #{critic_forward.1} parent=1 // pred_check_branch
      %1578 = sbr.rel (0) target = $region49
    $region48: #{critic_forward.1} parent=1 // pred_region
      _
    $region49: #{critic_forward.1} parent=1 // pred_fallthru
      _
    %1579 = vsyncpa [#allocation3], 1

</llo_original>
